<compile_context>
chip_gen: v5e
topology: v5e:2x2
jax: 0.10.0
libtpu: 0.0.40
codegen_flags: <defaults>
</compile_context>

<pallas_src>
import functools

import jax
import jax.numpy as jnp
from jax.experimental import pallas as pl
from jax.experimental.pallas import tpu as pltpu


def _recognition_odegru_kernel(x_ref, wih_ref, whh_ref, bgi_ref, bhhn_ref,
                               who_ref, bho_ref, out_ref, h_ref, gi_scr):
    H = whh_ref.shape[0]
    Bp = h_ref.shape[0]
    T = x_ref.shape[0] // Bp

    # Hoisted input projection for ALL time steps in one MXU matmul.
    # bgi = bias_ih + [bias_hh_r, bias_hh_z, 0] (pre-folded in the wrapper).
    gi_scr[...] = (jnp.dot(x_ref[...], wih_ref[...],
                           preferred_element_type=jnp.float32)
                   + bgi_ref[...])

    # Single hoisted broadcast of the n-gate hidden bias (cannot be folded
    # into gi because r multiplies the whole (h@Whh_n + bhh_n) term).
    bhh_n = jnp.broadcast_to(bhhn_ref[...], (Bp, H))

    # --- Peeled first reverse step (t = T-1): h == 0, so h@Whh == 0. ---
    gi = gi_scr[(T - 1) * Bp:T * Bp, :]                          # (Bp, 3H)
    rz = jax.nn.sigmoid(gi[:, 0:2 * H])                          # bhh_rz already in gi
    r = rz[:, 0:H]
    z = rz[:, H:2 * H]
    n = jnp.tanh(gi[:, 2 * H:3 * H] + r * bhh_n)
    h = n - z * n                                                # (1 - z) * n, h_prev = 0

    # --- Remaining reverse steps, fully unrolled (T is small and static). ---
    for t in reversed(range(T - 1)):
        gi = gi_scr[t * Bp:(t + 1) * Bp, :]                      # (Bp, 3H)
        gh = jnp.dot(h, whh_ref[...], preferred_element_type=jnp.float32)
        # torch.nn.GRUCell gate order is [r, z, n]; one sigmoid over 0:2H.
        rz = jax.nn.sigmoid(gi[:, 0:2 * H] + gh[:, 0:2 * H])
        r = rz[:, 0:H]
        z = rz[:, H:2 * H]
        n = jnp.tanh(gi[:, 2 * H:3 * H] + r * (gh[:, 2 * H:3 * H] + bhh_n))
        h = n + z * (h - n)                                      # == (1-z)*n + z*h

    # Single final writeback of h and the h2o head (only the last step's out
    # survives in the PyTorch module).
    h_ref[...] = h.astype(h_ref.dtype)
    out_ref[...] = (jnp.dot(h, who_ref[...], preferred_element_type=jnp.float32)
                    + bho_ref[...]).astype(out_ref.dtype)


def recognition_odegru_forward(x, ts, params):
    """x: (B, T, z_size); ts is unused (ode_solver=None).  Returns (out, (h, c))."""
    del ts
    B, T, Z = x.shape
    H = params["weight_hh"].shape[1]
    L2 = params["h2o_weight"].shape[0]

    SUBLANE, LANE = 8, 128
    Bp = ((B + SUBLANE - 1) // SUBLANE) * SUBLANE       # pad batch to sublane granule
    L2p = ((L2 + LANE - 1) // LANE) * LANE              # lane-dense h2o output

    wih_t = params["weight_ih"].T.astype(jnp.float32)   # (Z, 3H)
    whh_t = params["weight_hh"].T.astype(jnp.float32)   # (H, 3H)
    bih = params["bias_ih"].astype(jnp.float32)
    bhh = params["bias_hh"].astype(jnp.float32)
    # Fold bias_hh for the r/z columns into the projection bias; keep the
    # n-gate hidden bias separate (it sits inside the r * (...) product).
    b_gi = (bih + jnp.concatenate([bhh[:2 * H], jnp.zeros((H,), jnp.float32)]))[None, :]
    bhh_n = bhh[2 * H:3 * H][None, :]                   # (1, H)

    who_t = jnp.zeros((H, L2p), jnp.float32).at[:, :L2].set(
        params["h2o_weight"].T.astype(jnp.float32))
    bho = jnp.zeros((1, L2p), jnp.float32).at[:, :L2].set(
        params["h2o_bias"].astype(jnp.float32))

    # Time-major, batch padded, flattened to (T*Bp, Z) so the kernel's hoisted
    # input projection is one dense matmul.  (At these shapes the wrapper-side
    # transpose/pad is <64 KiB; if the producer can hand over time-major x
    # directly, this reshuffle can be dropped.)
    x_tm = jnp.transpose(x, (1, 0, 2)).astype(jnp.float32)       # (T, B, Z)
    x_tm = jnp.pad(x_tm, ((0, 0), (0, Bp - B), (0, 0)))
    x_flat = x_tm.reshape(T * Bp, Z)

    vmem = functools.partial(pl.BlockSpec, memory_space=pltpu.MemorySpace.VMEM)

    out_p, h_p = pl.pallas_call(
        _recognition_odegru_kernel,
        out_shape=(
            jax.ShapeDtypeStruct((Bp, L2p), jnp.float32),
            jax.ShapeDtypeStruct((Bp, H), jnp.float32),
        ),
        in_specs=[vmem() for _ in range(7)],
        out_specs=(vmem(), vmem()),
        scratch_shapes=[pltpu.VMEM((T * Bp, 3 * H), jnp.float32)],
    )(x_flat, wih_t, whh_t, b_gi, bhh_n, who_t, bho)

    out = out_p[:B, :L2].astype(x.dtype)
    h = h_p[:B, :].astype(x.dtype)
    c = jnp.zeros((B, H), x.dtype)        # c is never updated in the module
    return out, (h, c)


def init_params(key, z_size, latent_dim):
    """Deterministic parameter init mimicking PyTorch's uniform(-1/sqrt(H), 1/sqrt(H))."""
    H = z_size                            # nhidden1 = z_size in RecognitionODEGRU
    L = latent_dim
    ks = jax.random.split(key, 6)
    kg = 1.0 / jnp.sqrt(H)
    kl = 1.0 / jnp.sqrt(H)
    u = lambda k, shape, bnd: jax.random.uniform(k, shape, jnp.float32, -bnd, bnd)
    return {
        "weight_ih": u(ks[0], (3 * H, z_size), kg),   # torch GRUCell weight_ih
        "weight_hh": u(ks[1], (3 * H, H), kg),        # torch GRUCell weight_hh
        "bias_ih": u(ks[2], (3 * H,), kg),
        "bias_hh": u(ks[3], (3 * H,), kg),
        "h2o_weight": u(ks[4], (2 * L, H), kl),       # torch Linear(H, 2L).weight
        "h2o_bias": u(ks[5], (2 * L,), kl),
    }


def _reference_forward(x, params):
    """Pure-JAX reference of the PyTorch forward (ode_solver=None)."""
    B, T, Z = x.shape
    H = params["weight_hh"].shape[1]
    wih_t = params["weight_ih"].T
    whh_t = params["weight_hh"].T
    who_t = params["h2o_weight"].T
    h = jnp.zeros((B, H), jnp.float32)
    out = None
    for t in reversed(range(T)):
        obs = x[:, t, :]
        gi = obs @ wih_t + params["bias_ih"]
        gh = h @ whh_t + params["bias_hh"]
        r = jax.nn.sigmoid(gi[:, 0:H] + gh[:, 0:H])
        z = jax.nn.sigmoid(gi[:, H:2 * H] + gh[:, H:2 * H])
        n = jnp.tanh(gi[:, 2 * H:3 * H] + r * gh[:, 2 * H:3 * H])
        h = (1.0 - z) * n + z * h
        out = h @ who_t + params["h2o_bias"]
    c = jnp.zeros((B, H), jnp.float32)
    return out, (h, c)


if __name__ == "__main__":
    B, T, Z, L = 4, 8, 128, 4   # batch, seq len, z_size (=nhidden), latent_dim

    key = jax.random.PRNGKey(0)
    kx, kp = jax.random.split(key)
    x = jax.random.normal(kx, (B, T, Z), jnp.float32)
    ts = jnp.broadcast_to(jnp.linspace(0.0, 1.0, T), (B, T))   # unused (no ODE solver)
    params = init_params(kp, z_size=Z, latent_dim=L)

    fwd = jax.jit(functools.partial(recognition_odegru_forward, params=params))
    out, (h, c) = fwd(x, ts)
    jax.block_until_ready((out, h, c))

    out_ref, (h_ref, c_ref) = _reference_forward(x, params)
    assert out.shape == (B, 2 * L) and h.shape == (B, Z) and c.shape == (B, Z)
    assert jnp.allclose(out, out_ref, rtol=1e-4, atol=1e-4)
    assert jnp.allclose(h, h_ref, rtol=1e-4, atol=1e-4)
    assert jnp.allclose(c, c_ref)

    print("KERNEL_OK")
</pallas_src>

<mosaic_0001>
module attributes {stable_mosaic.version = 11 : i64} {
  func.func @_recognition_odegru_kernel(%arg0: memref<64x128xf32, #tpu.memory_space<vmem>>, %arg1: memref<128x384xf32, #tpu.memory_space<vmem>>, %arg2: memref<128x384xf32, #tpu.memory_space<vmem>>, %arg3: memref<1x384xf32, #tpu.memory_space<vmem>>, %arg4: memref<1x128xf32, #tpu.memory_space<vmem>>, %arg5: memref<128x128xf32, #tpu.memory_space<vmem>>, %arg6: memref<1x128xf32, #tpu.memory_space<vmem>>, %arg7: memref<8x128xf32, #tpu.memory_space<vmem>>, %arg8: memref<8x128xf32, #tpu.memory_space<vmem>>, %arg9: memref<64x384xf32, #tpu.memory_space<vmem>>) attributes {dimension_semantics = [], scalar_prefetch = 0 : i64, scratch_operands = 1 : i64, tpu.core_type = #tpu.core_type<tc>} {
    %c0 = arith.constant 0 : index
    %c0_0 = arith.constant 0 : index
    %0 = vector.load %arg0[%c0, %c0_0] : memref<64x128xf32, #tpu.memory_space<vmem>>, vector<64x128xf32>
    %c0_1 = arith.constant 0 : index
    %c0_2 = arith.constant 0 : index
    %1 = vector.load %arg1[%c0_1, %c0_2] : memref<128x384xf32, #tpu.memory_space<vmem>>, vector<128x384xf32>
    %cst = arith.constant dense<0.000000e+00> : vector<64x384xf32>
    %2 = tpu.matmul %0, %1, %cst {dimension_numbers = #tpu.dot_dimension_numbers<[1], [0], [0], [1], [0, 0, 1, 1], [], []>} : vector<64x128xf32>, vector<128x384xf32>, vector<64x384xf32> -> vector<64x384xf32>
    %c0_3 = arith.constant 0 : index
    %c0_4 = arith.constant 0 : index
    %3 = vector.load %arg3[%c0_3, %c0_4] : memref<1x384xf32, #tpu.memory_space<vmem>>, vector<1x384xf32>
    %4 = vector.broadcast %3 : vector<1x384xf32> to vector<64x384xf32>
    %5 = arith.addf %2, %4 : vector<64x384xf32>
    %c0_5 = arith.constant 0 : index
    %c0_6 = arith.constant 0 : index
    %6 = vector.load %arg9[%c0_5, %c0_6] : memref<64x384xf32, #tpu.memory_space<vmem>>, vector<64x384xf32>
    tpu.vector_store %arg9[%c0_5, %c0_6], %5 {strides = array<i32>} : memref<64x384xf32, #tpu.memory_space<vmem>>, vector<64x384xf32>,
    %c0_7 = arith.constant 0 : index
    %c0_8 = arith.constant 0 : index
    %7 = vector.load %arg4[%c0_7, %c0_8] : memref<1x128xf32, #tpu.memory_space<vmem>>, vector<1x128xf32>
    %8 = vector.shape_cast %7 : vector<1x128xf32> to vector<1x128xf32>
    %9 = vector.broadcast %8 : vector<1x128xf32> to vector<8x128xf32>
    %c56 = arith.constant 56 : index
    %c0_9 = arith.constant 0 : index
    %10 = vector.load %arg9[%c56, %c0_9] : memref<64x384xf32, #tpu.memory_space<vmem>>, vector<8x384xf32>
    %11 = vector.extract_strided_slice %10 {offsets = [0, 0], sizes = [8, 256], strides = [1, 1]} : vector<8x384xf32> to vector<8x256xf32>
    %12 = arith.negf %11 : vector<8x256xf32>
    %13 = math.exp %12 : vector<8x256xf32>
    %cst_10 = arith.constant 1.000000e+00 : f32
    %14 = vector.broadcast %cst_10 : f32 to vector<8x256xf32>
    %15 = arith.addf %14, %13 : vector<8x256xf32>
    %16 = arith.divf %14, %15 : vector<8x256xf32>
    %17 = vector.extract_strided_slice %16 {offsets = [0, 0], sizes = [8, 128], strides = [1, 1]} : vector<8x256xf32> to vector<8x128xf32>
    %18 = vector.extract_strided_slice %16 {offsets = [0, 128], sizes = [8, 128], strides = [1, 1]} : vector<8x256xf32> to vector<8x128xf32>
    %19 = vector.extract_strided_slice %10 {offsets = [0, 256], sizes = [8, 128], strides = [1, 1]} : vector<8x384xf32> to vector<8x128xf32>
    %20 = arith.mulf %17, %9 : vector<8x128xf32>
    %21 = arith.addf %19, %20 : vector<8x128xf32>
    %22 = math.tanh %21 : vector<8x128xf32>
    %23 = arith.mulf %18, %22 : vector<8x128xf32>
    %24 = arith.subf %22, %23 : vector<8x128xf32>
    %c48 = arith.constant 48 : index
    %c0_11 = arith.constant 0 : index
    %25 = vector.load %arg9[%c48, %c0_11] : memref<64x384xf32, #tpu.memory_space<vmem>>, vector<8x384xf32>
    %c0_12 = arith.constant 0 : index
    %c0_13 = arith.constant 0 : index
    %26 = vector.load %arg2[%c0_12, %c0_13] : memref<128x384xf32, #tpu.memory_space<vmem>>, vector<128x384xf32>
    %cst_14 = arith.constant dense<0.000000e+00> : vector<8x384xf32>
    %27 = tpu.matmul %24, %26, %cst_14 {dimension_numbers = #tpu.dot_dimension_numbers<[1], [0], [0], [1], [0, 0, 1, 1], [], []>} : vector<8x128xf32>, vector<128x384xf32>, vector<8x384xf32> -> vector<8x384xf32>
    %28 = vector.extract_strided_slice %25 {offsets = [0, 0], sizes = [8, 256], strides = [1, 1]} : vector<8x384xf32> to vector<8x256xf32>
    %29 = vector.extract_strided_slice %27 {offsets = [0, 0], sizes = [8, 256], strides = [1, 1]} : vector<8x384xf32> to vector<8x256xf32>
    %30 = arith.addf %28, %29 : vector<8x256xf32>
    %31 = arith.negf %30 : vector<8x256xf32>
    %32 = math.exp %31 : vector<8x256xf32>
    %cst_15 = arith.constant 1.000000e+00 : f32
    %33 = vector.broadcast %cst_15 : f32 to vector<8x256xf32>
    %34 = arith.addf %33, %32 : vector<8x256xf32>
    %35 = arith.divf %33, %34 : vector<8x256xf32>
    %36 = vector.extract_strided_slice %35 {offsets = [0, 0], sizes = [8, 128], strides = [1, 1]} : vector<8x256xf32> to vector<8x128xf32>
    %37 = vector.extract_strided_slice %35 {offsets = [0, 128], sizes = [8, 128], strides = [1, 1]} : vector<8x256xf32> to vector<8x128xf32>
    %38 = vector.extract_strided_slice %25 {offsets = [0, 256], sizes = [8, 128], strides = [1, 1]} : vector<8x384xf32> to vector<8x128xf32>
    %39 = vector.extract_strided_slice %27 {offsets = [0, 256], sizes = [8, 128], strides = [1, 1]} : vector<8x384xf32> to vector<8x128xf32>
    %40 = arith.addf %39, %9 : vector<8x128xf32>
    %41 = arith.mulf %36, %40 : vector<8x128xf32>
    %42 = arith.addf %38, %41 : vector<8x128xf32>
    %43 = math.tanh %42 : vector<8x128xf32>
    %44 = arith.subf %24, %43 : vector<8x128xf32>
    %45 = arith.mulf %37, %44 : vector<8x128xf32>
    %46 = arith.addf %43, %45 : vector<8x128xf32>
    %c40 = arith.constant 40 : index
    %c0_16 = arith.constant 0 : index
    %47 = vector.load %arg9[%c40, %c0_16] : memref<64x384xf32, #tpu.memory_space<vmem>>, vector<8x384xf32>
    %c0_17 = arith.constant 0 : index
    %c0_18 = arith.constant 0 : index
    %48 = vector.load %arg2[%c0_17, %c0_18] : memref<128x384xf32, #tpu.memory_space<vmem>>, vector<128x384xf32>
    %cst_19 = arith.constant dense<0.000000e+00> : vector<8x384xf32>
    %49 = tpu.matmul %46, %48, %cst_19 {dimension_numbers = #tpu.dot_dimension_numbers<[1], [0], [0], [1], [0, 0, 1, 1], [], []>} : vector<8x128xf32>, vector<128x384xf32>, vector<8x384xf32> -> vector<8x384xf32>
    %50 = vector.extract_strided_slice %47 {offsets = [0, 0], sizes = [8, 256], strides = [1, 1]} : vector<8x384xf32> to vector<8x256xf32>
    %51 = vector.extract_strided_slice %49 {offsets = [0, 0], sizes = [8, 256], strides = [1, 1]} : vector<8x384xf32> to vector<8x256xf32>
    %52 = arith.addf %50, %51 : vector<8x256xf32>
    %53 = arith.negf %52 : vector<8x256xf32>
    %54 = math.exp %53 : vector<8x256xf32>
    %cst_20 = arith.constant 1.000000e+00 : f32
    %55 = vector.broadcast %cst_20 : f32 to vector<8x256xf32>
    %56 = arith.addf %55, %54 : vector<8x256xf32>
    %57 = arith.divf %55, %56 : vector<8x256xf32>
    %58 = vector.extract_strided_slice %57 {offsets = [0, 0], sizes = [8, 128], strides = [1, 1]} : vector<8x256xf32> to vector<8x128xf32>
    %59 = vector.extract_strided_slice %57 {offsets = [0, 128], sizes = [8, 128], strides = [1, 1]} : vector<8x256xf32> to vector<8x128xf32>
    %60 = vector.extract_strided_slice %47 {offsets = [0, 256], sizes = [8, 128], strides = [1, 1]} : vector<8x384xf32> to vector<8x128xf32>
    %61 = vector.extract_strided_slice %49 {offsets = [0, 256], sizes = [8, 128], strides = [1, 1]} : vector<8x384xf32> to vector<8x128xf32>
    %62 = arith.addf %61, %9 : vector<8x128xf32>
    %63 = arith.mulf %58, %62 : vector<8x128xf32>
    %64 = arith.addf %60, %63 : vector<8x128xf32>
    %65 = math.tanh %64 : vector<8x128xf32>
    %66 = arith.subf %46, %65 : vector<8x128xf32>
    %67 = arith.mulf %59, %66 : vector<8x128xf32>
    %68 = arith.addf %65, %67 : vector<8x128xf32>
    %c32 = arith.constant 32 : index
    %c0_21 = arith.constant 0 : index
    %69 = vector.load %arg9[%c32, %c0_21] : memref<64x384xf32, #tpu.memory_space<vmem>>, vector<8x384xf32>
    %c0_22 = arith.constant 0 : index
    %c0_23 = arith.constant 0 : index
    %70 = vector.load %arg2[%c0_22, %c0_23] : memref<128x384xf32, #tpu.memory_space<vmem>>, vector<128x384xf32>
    %cst_24 = arith.constant dense<0.000000e+00> : vector<8x384xf32>
    %71 = tpu.matmul %68, %70, %cst_24 {dimension_numbers = #tpu.dot_dimension_numbers<[1], [0], [0], [1], [0, 0, 1, 1], [], []>} : vector<8x128xf32>, vector<128x384xf32>, vector<8x384xf32> -> vector<8x384xf32>
    %72 = vector.extract_strided_slice %69 {offsets = [0, 0], sizes = [8, 256], strides = [1, 1]} : vector<8x384xf32> to vector<8x256xf32>
    %73 = vector.extract_strided_slice %71 {offsets = [0, 0], sizes = [8, 256], strides = [1, 1]} : vector<8x384xf32> to vector<8x256xf32>
    %74 = arith.addf %72, %73 : vector<8x256xf32>
    %75 = arith.negf %74 : vector<8x256xf32>
    %76 = math.exp %75 : vector<8x256xf32>
    %cst_25 = arith.constant 1.000000e+00 : f32
    %77 = vector.broadcast %cst_25 : f32 to vector<8x256xf32>
    %78 = arith.addf %77, %76 : vector<8x256xf32>
    %79 = arith.divf %77, %78 : vector<8x256xf32>
    %80 = vector.extract_strided_slice %79 {offsets = [0, 0], sizes = [8, 128], strides = [1, 1]} : vector<8x256xf32> to vector<8x128xf32>
    %81 = vector.extract_strided_slice %79 {offsets = [0, 128], sizes = [8, 128], strides = [1, 1]} : vector<8x256xf32> to vector<8x128xf32>
    %82 = vector.extract_strided_slice %69 {offsets = [0, 256], sizes = [8, 128], strides = [1, 1]} : vector<8x384xf32> to vector<8x128xf32>
    %83 = vector.extract_strided_slice %71 {offsets = [0, 256], sizes = [8, 128], strides = [1, 1]} : vector<8x384xf32> to vector<8x128xf32>
    %84 = arith.addf %83, %9 : vector<8x128xf32>
    %85 = arith.mulf %80, %84 : vector<8x128xf32>
    %86 = arith.addf %82, %85 : vector<8x128xf32>
    %87 = math.tanh %86 : vector<8x128xf32>
    %88 = arith.subf %68, %87 : vector<8x128xf32>
    %89 = arith.mulf %81, %88 : vector<8x128xf32>
    %90 = arith.addf %87, %89 : vector<8x128xf32>
    %c24 = arith.constant 24 : index
    %c0_26 = arith.constant 0 : index
    %91 = vector.load %arg9[%c24, %c0_26] : memref<64x384xf32, #tpu.memory_space<vmem>>, vector<8x384xf32>
    %c0_27 = arith.constant 0 : index
    %c0_28 = arith.constant 0 : index
    %92 = vector.load %arg2[%c0_27, %c0_28] : memref<128x384xf32, #tpu.memory_space<vmem>>, vector<128x384xf32>
    %cst_29 = arith.constant dense<0.000000e+00> : vector<8x384xf32>
    %93 = tpu.matmul %90, %92, %cst_29 {dimension_numbers = #tpu.dot_dimension_numbers<[1], [0], [0], [1], [0, 0, 1, 1], [], []>} : vector<8x128xf32>, vector<128x384xf32>, vector<8x384xf32> -> vector<8x384xf32>
    %94 = vector.extract_strided_slice %91 {offsets = [0, 0], sizes = [8, 256], strides = [1, 1]} : vector<8x384xf32> to vector<8x256xf32>
    %95 = vector.extract_strided_slice %93 {offsets = [0, 0], sizes = [8, 256], strides = [1, 1]} : vector<8x384xf32> to vector<8x256xf32>
    %96 = arith.addf %94, %95 : vector<8x256xf32>
    %97 = arith.negf %96 : vector<8x256xf32>
    %98 = math.exp %97 : vector<8x256xf32>
    %cst_30 = arith.constant 1.000000e+00 : f32
    %99 = vector.broadcast %cst_30 : f32 to vector<8x256xf32>
    %100 = arith.addf %99, %98 : vector<8x256xf32>
    %101 = arith.divf %99, %100 : vector<8x256xf32>
    %102 = vector.extract_strided_slice %101 {offsets = [0, 0], sizes = [8, 128], strides = [1, 1]} : vector<8x256xf32> to vector<8x128xf32>
    %103 = vector.extract_strided_slice %101 {offsets = [0, 128], sizes = [8, 128], strides = [1, 1]} : vector<8x256xf32> to vector<8x128xf32>
    %104 = vector.extract_strided_slice %91 {offsets = [0, 256], sizes = [8, 128], strides = [1, 1]} : vector<8x384xf32> to vector<8x128xf32>
    %105 = vector.extract_strided_slice %93 {offsets = [0, 256], sizes = [8, 128], strides = [1, 1]} : vector<8x384xf32> to vector<8x128xf32>
    %106 = arith.addf %105, %9 : vector<8x128xf32>
    %107 = arith.mulf %102, %106 : vector<8x128xf32>
    %108 = arith.addf %104, %107 : vector<8x128xf32>
    %109 = math.tanh %108 : vector<8x128xf32>
    %110 = arith.subf %90, %109 : vector<8x128xf32>
    %111 = arith.mulf %103, %110 : vector<8x128xf32>
    %112 = arith.addf %109, %111 : vector<8x128xf32>
    %c16 = arith.constant 16 : index
    %c0_31 = arith.constant 0 : index
    %113 = vector.load %arg9[%c16, %c0_31] : memref<64x384xf32, #tpu.memory_space<vmem>>, vector<8x384xf32>
    %c0_32 = arith.constant 0 : index
    %c0_33 = arith.constant 0 : index
    %114 = vector.load %arg2[%c0_32, %c0_33] : memref<128x384xf32, #tpu.memory_space<vmem>>, vector<128x384xf32>
    %cst_34 = arith.constant dense<0.000000e+00> : vector<8x384xf32>
    %115 = tpu.matmul %112, %114, %cst_34 {dimension_numbers = #tpu.dot_dimension_numbers<[1], [0], [0], [1], [0, 0, 1, 1], [], []>} : vector<8x128xf32>, vector<128x384xf32>, vector<8x384xf32> -> vector<8x384xf32>
    %116 = vector.extract_strided_slice %113 {offsets = [0, 0], sizes = [8, 256], strides = [1, 1]} : vector<8x384xf32> to vector<8x256xf32>
    %117 = vector.extract_strided_slice %115 {offsets = [0, 0], sizes = [8, 256], strides = [1, 1]} : vector<8x384xf32> to vector<8x256xf32>
    %118 = arith.addf %116, %117 : vector<8x256xf32>
    %119 = arith.negf %118 : vector<8x256xf32>
    %120 = math.exp %119 : vector<8x256xf32>
    %cst_35 = arith.constant 1.000000e+00 : f32
    %121 = vector.broadcast %cst_35 : f32 to vector<8x256xf32>
    %122 = arith.addf %121, %120 : vector<8x256xf32>
    %123 = arith.divf %121, %122 : vector<8x256xf32>
    %124 = vector.extract_strided_slice %123 {offsets = [0, 0], sizes = [8, 128], strides = [1, 1]} : vector<8x256xf32> to vector<8x128xf32>
    %125 = vector.extract_strided_slice %123 {offsets = [0, 128], sizes = [8, 128], strides = [1, 1]} : vector<8x256xf32> to vector<8x128xf32>
    %126 = vector.extract_strided_slice %113 {offsets = [0, 256], sizes = [8, 128], strides = [1, 1]} : vector<8x384xf32> to vector<8x128xf32>
    %127 = vector.extract_strided_slice %115 {offsets = [0, 256], sizes = [8, 128], strides = [1, 1]} : vector<8x384xf32> to vector<8x128xf32>
    %128 = arith.addf %127, %9 : vector<8x128xf32>
    %129 = arith.mulf %124, %128 : vector<8x128xf32>
    %130 = arith.addf %126, %129 : vector<8x128xf32>
    %131 = math.tanh %130 : vector<8x128xf32>
    %132 = arith.subf %112, %131 : vector<8x128xf32>
    %133 = arith.mulf %125, %132 : vector<8x128xf32>
    %134 = arith.addf %131, %133 : vector<8x128xf32>
    %c8 = arith.constant 8 : index
    %c0_36 = arith.constant 0 : index
    %135 = vector.load %arg9[%c8, %c0_36] : memref<64x384xf32, #tpu.memory_space<vmem>>, vector<8x384xf32>
    %c0_37 = arith.constant 0 : index
    %c0_38 = arith.constant 0 : index
    %136 = vector.load %arg2[%c0_37, %c0_38] : memref<128x384xf32, #tpu.memory_space<vmem>>, vector<128x384xf32>
    %cst_39 = arith.constant dense<0.000000e+00> : vector<8x384xf32>
    %137 = tpu.matmul %134, %136, %cst_39 {dimension_numbers = #tpu.dot_dimension_numbers<[1], [0], [0], [1], [0, 0, 1, 1], [], []>} : vector<8x128xf32>, vector<128x384xf32>, vector<8x384xf32> -> vector<8x384xf32>
    %138 = vector.extract_strided_slice %135 {offsets = [0, 0], sizes = [8, 256], strides = [1, 1]} : vector<8x384xf32> to vector<8x256xf32>
    %139 = vector.extract_strided_slice %137 {offsets = [0, 0], sizes = [8, 256], strides = [1, 1]} : vector<8x384xf32> to vector<8x256xf32>
    %140 = arith.addf %138, %139 : vector<8x256xf32>
    %141 = arith.negf %140 : vector<8x256xf32>
    %142 = math.exp %141 : vector<8x256xf32>
    %cst_40 = arith.constant 1.000000e+00 : f32
    %143 = vector.broadcast %cst_40 : f32 to vector<8x256xf32>
    %144 = arith.addf %143, %142 : vector<8x256xf32>
    %145 = arith.divf %143, %144 : vector<8x256xf32>
    %146 = vector.extract_strided_slice %145 {offsets = [0, 0], sizes = [8, 128], strides = [1, 1]} : vector<8x256xf32> to vector<8x128xf32>
    %147 = vector.extract_strided_slice %145 {offsets = [0, 128], sizes = [8, 128], strides = [1, 1]} : vector<8x256xf32> to vector<8x128xf32>
    %148 = vector.extract_strided_slice %135 {offsets = [0, 256], sizes = [8, 128], strides = [1, 1]} : vector<8x384xf32> to vector<8x128xf32>
    %149 = vector.extract_strided_slice %137 {offsets = [0, 256], sizes = [8, 128], strides = [1, 1]} : vector<8x384xf32> to vector<8x128xf32>
    %150 = arith.addf %149, %9 : vector<8x128xf32>
    %151 = arith.mulf %146, %150 : vector<8x128xf32>
    %152 = arith.addf %148, %151 : vector<8x128xf32>
    %153 = math.tanh %152 : vector<8x128xf32>
    %154 = arith.subf %134, %153 : vector<8x128xf32>
    %155 = arith.mulf %147, %154 : vector<8x128xf32>
    %156 = arith.addf %153, %155 : vector<8x128xf32>
    %c0_41 = arith.constant 0 : index
    %c0_42 = arith.constant 0 : index
    %157 = vector.load %arg9[%c0_41, %c0_42] : memref<64x384xf32, #tpu.memory_space<vmem>>, vector<8x384xf32>
    %c0_43 = arith.constant 0 : index
    %c0_44 = arith.constant 0 : index
    %158 = vector.load %arg2[%c0_43, %c0_44] : memref<128x384xf32, #tpu.memory_space<vmem>>, vector<128x384xf32>
    %cst_45 = arith.constant dense<0.000000e+00> : vector<8x384xf32>
    %159 = tpu.matmul %156, %158, %cst_45 {dimension_numbers = #tpu.dot_dimension_numbers<[1], [0], [0], [1], [0, 0, 1, 1], [], []>} : vector<8x128xf32>, vector<128x384xf32>, vector<8x384xf32> -> vector<8x384xf32>
    %160 = vector.extract_strided_slice %157 {offsets = [0, 0], sizes = [8, 256], strides = [1, 1]} : vector<8x384xf32> to vector<8x256xf32>
    %161 = vector.extract_strided_slice %159 {offsets = [0, 0], sizes = [8, 256], strides = [1, 1]} : vector<8x384xf32> to vector<8x256xf32>
    %162 = arith.addf %160, %161 : vector<8x256xf32>
    %163 = arith.negf %162 : vector<8x256xf32>
    %164 = math.exp %163 : vector<8x256xf32>
    %cst_46 = arith.constant 1.000000e+00 : f32
    %165 = vector.broadcast %cst_46 : f32 to vector<8x256xf32>
    %166 = arith.addf %165, %164 : vector<8x256xf32>
    %167 = arith.divf %165, %166 : vector<8x256xf32>
    %168 = vector.extract_strided_slice %167 {offsets = [0, 0], sizes = [8, 128], strides = [1, 1]} : vector<8x256xf32> to vector<8x128xf32>
    %169 = vector.extract_strided_slice %167 {offsets = [0, 128], sizes = [8, 128], strides = [1, 1]} : vector<8x256xf32> to vector<8x128xf32>
    %170 = vector.extract_strided_slice %157 {offsets = [0, 256], sizes = [8, 128], strides = [1, 1]} : vector<8x384xf32> to vector<8x128xf32>
    %171 = vector.extract_strided_slice %159 {offsets = [0, 256], sizes = [8, 128], strides = [1, 1]} : vector<8x384xf32> to vector<8x128xf32>
    %172 = arith.addf %171, %9 : vector<8x128xf32>
    %173 = arith.mulf %168, %172 : vector<8x128xf32>
    %174 = arith.addf %170, %173 : vector<8x128xf32>
    %175 = math.tanh %174 : vector<8x128xf32>
    %176 = arith.subf %156, %175 : vector<8x128xf32>
    %177 = arith.mulf %169, %176 : vector<8x128xf32>
    %178 = arith.addf %175, %177 : vector<8x128xf32>
    %c0_47 = arith.constant 0 : index
    %c0_48 = arith.constant 0 : index
    %179 = vector.load %arg8[%c0_47, %c0_48] : memref<8x128xf32, #tpu.memory_space<vmem>>, vector<8x128xf32>
    tpu.vector_store %arg8[%c0_47, %c0_48], %178 {strides = array<i32>} : memref<8x128xf32, #tpu.memory_space<vmem>>, vector<8x128xf32>,
    %c0_49 = arith.constant 0 : index
    %c0_50 = arith.constant 0 : index
    %180 = vector.load %arg5[%c0_49, %c0_50] : memref<128x128xf32, #tpu.memory_space<vmem>>, vector<128x128xf32>
    %cst_51 = arith.constant dense<0.000000e+00> : vector<8x128xf32>
    %181 = tpu.matmul %178, %180, %cst_51 {dimension_numbers = #tpu.dot_dimension_numbers<[1], [0], [0], [1], [0, 0, 1, 1], [], []>} : vector<8x128xf32>, vector<128x128xf32>, vector<8x128xf32> -> vector<8x128xf32>
    %c0_52 = arith.constant 0 : index
    %c0_53 = arith.constant 0 : index
    %182 = vector.load %arg6[%c0_52, %c0_53] : memref<1x128xf32, #tpu.memory_space<vmem>>, vector<1x128xf32>
    %183 = vector.broadcast %182 : vector<1x128xf32> to vector<8x128xf32>
    %184 = arith.addf %181, %183 : vector<8x128xf32>
    %c0_54 = arith.constant 0 : index
    %c0_55 = arith.constant 0 : index
    %185 = vector.load %arg7[%c0_54, %c0_55] : memref<8x128xf32, #tpu.memory_space<vmem>>, vector<8x128xf32>
    tpu.vector_store %arg7[%c0_54, %c0_55], %184 {strides = array<i32>} : memref<8x128xf32, #tpu.memory_space<vmem>>, vector<8x128xf32>,
    return
  }
}

</mosaic_0001>

<llo_original>
// kernel: recognition_odegru_forward.1
$region0: #{recognition_odegru_forward.1}
  #allocation0 [shape = 'u32[]', space=smem, size = 0x4, offset = 0x4, fixed_abs, tag = 'smem constant byte address 0x4 - core index']
  #allocation1 [shape = 'u32[72,128]{1,0:T(1,128)}', space=vmem, size = 0x9000, scoped, tag = 'internal scratch']
  #allocation2 [shape = 'f32[64,384]{1,0:T(8,128)}', space=vmem, size = 0x18000, scoped, tag = 'scratch operand']
  %s0 = inlined_call_operand.vmem [shape: f32[64,128], index: 0, kind: input, shape index: {}]
  %s1 = inlined_call_operand.vmem [shape: f32[128,384], index: 1, kind: input, shape index: {}]
  %s2 = inlined_call_operand.hbm [shape: f32[128,384], index: 2, kind: input, shape index: {}]
  %s3 = inlined_call_operand.vmem [shape: f32[1,384], index: 3, kind: input, shape index: {}]
  %s4 = inlined_call_operand.vmem [shape: f32[1,128], index: 4, kind: input, shape index: {}]
  %s5 = inlined_call_operand.vmem [shape: f32[128,128], index: 5, kind: input, shape index: {}]
  %s6 = inlined_call_operand.vmem [shape: f32[1,128], index: 6, kind: input, shape index: {}]
  %s7 = inlined_call_operand.vmem [shape: f32[8,128], index: 7, kind: output, shape index: {0}]
  %s8 = inlined_call_operand.vmem [shape: f32[8,128], index: 8, kind: output, shape index: {1}]
  %9 = xla_tuple %s7, %s8
  %s10 = sld [smem:[#allocation0]]
  $region50: #{recognition_odegru_forward.1} parent=0
    _
  %s12 = ssub.s32 1, %s10
  %s13 = scalar_select 0, %s12, %s10
  $region1: #{recognition_odegru_forward.1} parent=0
    #allocation3 [shape = 'u8[196608]{0}', space=vmem, size = 0x30000, scoped, tag = 'input window, operand 2, single buffered']
    #allocation4 [shape = 's32[1]{0}', space=sflag, size = 0x4, scoped, tag = 'scoped memory for recognition_odegru_forward.1']
    %14 = vsyncpa [#allocation4], 0
    // Predicated region
    $region2: #{recognition_odegru_forward.1} parent=1 // pred_check
      _
    $region3: #{recognition_odegru_forward.1} parent=1 // pred_check_branch
      %16 = sbr.rel (0) target = $region5
    $region4: #{recognition_odegru_forward.1} parent=1 // pred_region
      _
    $region5: #{recognition_odegru_forward.1} parent=1 // pred_fallthru
      _
    // Predicated region
    $region6: #{recognition_odegru_forward.1} parent=1 // pred_check
      _
    $region7: #{recognition_odegru_forward.1} parent=1 // pred_check_branch
      %18 = sbr.rel (0) target = $region9
    $region8: #{recognition_odegru_forward.1} parent=1 // pred_region
      _
    $region9: #{recognition_odegru_forward.1} parent=1 // pred_fallthru
      _
    // Predicated region
    $region10: #{recognition_odegru_forward.1} parent=1 // pred_check
      _
    $region11: #{recognition_odegru_forward.1} parent=1 // pred_check_branch
      %20 = sbr.rel (0) target = $region13
    $region12: #{recognition_odegru_forward.1} parent=1 // pred_region
      %22 = vsyncadd [#allocation4], 0
      %s23 = sshll.u32 %s2, 4
      %s24 = int_to_ptr.hbm [resolvable:$true] %s23
      %s25 = sshll.u32 [#allocation3], 4
      %s26 = int_to_ptr.vmem [resolvable:$true] %s25
      %31 = dma.hbm_to_vmem [thread:$0]  %s24, 6144, %s26, [#allocation4], 384, 384, 24
    $region13: #{recognition_odegru_forward.1} parent=1 // pred_fallthru
      _
    // Predicated region
    $region14: #{recognition_odegru_forward.1} parent=1 // pred_check
      _
    $region15: #{recognition_odegru_forward.1} parent=1 // pred_check_branch
      %33 = sbr.rel (0) target = $region17
    $region16: #{recognition_odegru_forward.1} parent=1 // pred_region
      _
    $region17: #{recognition_odegru_forward.1} parent=1 // pred_fallthru
      _
    // Predicated region
    $region18: #{recognition_odegru_forward.1} parent=1 // pred_check
      _
    $region19: #{recognition_odegru_forward.1} parent=1 // pred_check_branch
      %35 = sbr.rel (0) target = $region21
    $region20: #{recognition_odegru_forward.1} parent=1 // pred_region
      _
    $region21: #{recognition_odegru_forward.1} parent=1 // pred_fallthru
      _
    // Predicated region
    $region22: #{recognition_odegru_forward.1} parent=1 // pred_check
      _
    $region23: #{recognition_odegru_forward.1} parent=1 // pred_check_branch
      %37 = sbr.rel (0) target = $region25
    $region24: #{recognition_odegru_forward.1} parent=1 // pred_region
      _
    $region25: #{recognition_odegru_forward.1} parent=1 // pred_fallthru
      _
    // Predicated region
    $region26: #{recognition_odegru_forward.1} parent=1 // pred_check
      _
    $region27: #{recognition_odegru_forward.1} parent=1 // pred_check_branch
      %39 = sbr.rel (0) target = $region29
    $region28: #{recognition_odegru_forward.1} parent=1 // pred_region
      _
    $region29: #{recognition_odegru_forward.1} parent=1 // pred_fallthru
      _
    // Predicated region
    $region30: #{recognition_odegru_forward.1} parent=1 // pred_check
      _
    $region31: #{recognition_odegru_forward.1} parent=1 // pred_check_branch
      %41 = sbr.rel (0) target = $region33
    $region32: #{recognition_odegru_forward.1} parent=1 // pred_region
      %43 = dma.done [#allocation4], 6144
    $region33: #{recognition_odegru_forward.1} parent=1 // pred_fallthru
      _
    %v44 = vld [vmem:[%s0] sm:$0xff]
    %v45 = vld [vmem:[%s0 + $0x8] sm:$0xff]
    %v46 = vld [vmem:[%s0 + $0x10] sm:$0xff]
    %v47 = vld [vmem:[%s0 + $0x18] sm:$0xff]
    %v48 = vld [vmem:[%s0 + $0x20] sm:$0xff]
    %v49 = vld [vmem:[%s0 + $0x28] sm:$0xff]
    %v50 = vld [vmem:[%s0 + $0x30] sm:$0xff]
    %v51 = vld [vmem:[%s0 + $0x38] sm:$0xff]
    %v52 = vld [vmem:[%s1] sm:$0xff]
    %v53 = vld [vmem:[%s1 + $0x8] sm:$0xff]
    %v54 = vld [vmem:[%s1 + $0x10] sm:$0xff]
    %v55 = vld [vmem:[%s1 + $0x18] sm:$0xff]
    %v56 = vld [vmem:[%s1 + $0x20] sm:$0xff]
    %v57 = vld [vmem:[%s1 + $0x28] sm:$0xff]
    %v58 = vld [vmem:[%s1 + $0x30] sm:$0xff]
    %v59 = vld [vmem:[%s1 + $0x38] sm:$0xff]
    %v60 = vld [vmem:[%s1 + $0x40] sm:$0xff]
    %v61 = vld [vmem:[%s1 + $0x48] sm:$0xff]
    %v62 = vld [vmem:[%s1 + $0x50] sm:$0xff]
    %v63 = vld [vmem:[%s1 + $0x58] sm:$0xff]
    %v64 = vld [vmem:[%s1 + $0x60] sm:$0xff]
    %v65 = vld [vmem:[%s1 + $0x68] sm:$0xff]
    %v66 = vld [vmem:[%s1 + $0x70] sm:$0xff]
    %v67 = vld [vmem:[%s1 + $0x78] sm:$0xff]
    %v68 = vld [vmem:[%s1 + $0x80] sm:$0xff]
    %v69 = vld [vmem:[%s1 + $0x88] sm:$0xff]
    %v70 = vld [vmem:[%s1 + $0x90] sm:$0xff]
    %v71 = vld [vmem:[%s1 + $0x98] sm:$0xff]
    %v72 = vld [vmem:[%s1 + $0xa0] sm:$0xff]
    %v73 = vld [vmem:[%s1 + $0xa8] sm:$0xff]
    %v74 = vld [vmem:[%s1 + $0xb0] sm:$0xff]
    %v75 = vld [vmem:[%s1 + $0xb8] sm:$0xff]
    %v76 = vld [vmem:[%s1 + $0xc0] sm:$0xff]
    %v77 = vld [vmem:[%s1 + $0xc8] sm:$0xff]
    %v78 = vld [vmem:[%s1 + $0xd0] sm:$0xff]
    %v79 = vld [vmem:[%s1 + $0xd8] sm:$0xff]
    %v80 = vld [vmem:[%s1 + $0xe0] sm:$0xff]
    %v81 = vld [vmem:[%s1 + $0xe8] sm:$0xff]
    %v82 = vld [vmem:[%s1 + $0xf0] sm:$0xff]
    %v83 = vld [vmem:[%s1 + $0xf8] sm:$0xff]
    %v84 = vld [vmem:[%s1 + $0x100] sm:$0xff]
    %v85 = vld [vmem:[%s1 + $0x108] sm:$0xff]
    %v86 = vld [vmem:[%s1 + $0x110] sm:$0xff]
    %v87 = vld [vmem:[%s1 + $0x118] sm:$0xff]
    %v88 = vld [vmem:[%s1 + $0x120] sm:$0xff]
    %v89 = vld [vmem:[%s1 + $0x128] sm:$0xff]
    %v90 = vld [vmem:[%s1 + $0x130] sm:$0xff]
    %v91 = vld [vmem:[%s1 + $0x138] sm:$0xff]
    %v92 = vld [vmem:[%s1 + $0x140] sm:$0xff]
    %v93 = vld [vmem:[%s1 + $0x148] sm:$0xff]
    %v94 = vld [vmem:[%s1 + $0x150] sm:$0xff]
    %v95 = vld [vmem:[%s1 + $0x158] sm:$0xff]
    %v96 = vld [vmem:[%s1 + $0x160] sm:$0xff]
    %v97 = vld [vmem:[%s1 + $0x168] sm:$0xff]
    %v98 = vld [vmem:[%s1 + $0x170] sm:$0xff]
    %v99 = vld [vmem:[%s1 + $0x178] sm:$0xff]
    %v100 = vld [vmem:[%s3] sm:$0x7]
    %v102 = vperm.slane %v100, 0
    %v103 = vperm.slane %v100, 1
    %v104 = vperm.slane %v100, 2
    %108 = vmatpush.msra.mxu0 %v97
    %109 = vmatpush.msra.mxu0 %v94
    %110 = vmatpush.msra.mxu0 %v91
    %111 = vmatpush.msra.mxu0 %v88
    %112 = vmatpush.msra.mxu0 %v85
    %113 = vmatpush.msra.mxu0 %v82
    %114 = vmatpush.msra.mxu0 %v79
    %115 = vmatpush.msra.mxu0 %v76
    %116 = vmatpush.msra.mxu0 %v73
    %117 = vmatpush.msra.mxu0 %v70
    %118 = vmatpush.msra.mxu0 %v67
    %119 = vmatpush.msra.mxu0 %v64
    %120 = vmatpush.msra.mxu0 %v61
    %121 = vmatpush.msra.mxu0 %v58
    %122 = vmatpush.msra.mxu0 %v55
    %123 = vmatpush.msra.mxu0 %v52
    %124 = vmatmul.f32.gmra.mxu0 %v44
    %v125 = vpop.f32.mrf.mxu0
    %v126 = vadd.f32 %v102, %v125
    %127 = vmatmul.f32.gmra.mxu0 %v45
    %v128 = vpop.f32.mrf.mxu0
    %v129 = vadd.f32 %v102, %v128
    %130 = vmatmul.f32.gmra.mxu0 %v46
    %v131 = vpop.f32.mrf.mxu0
    %v132 = vadd.f32 %v102, %v131
    %133 = vmatmul.f32.gmra.mxu0 %v47
    %v134 = vpop.f32.mrf.mxu0
    %v135 = vadd.f32 %v102, %v134
    %136 = vmatmul.f32.gmra.mxu0 %v48
    %v137 = vpop.f32.mrf.mxu0
    %v138 = vadd.f32 %v102, %v137
    %139 = vmatmul.f32.gmra.mxu0 %v49
    %v140 = vpop.f32.mrf.mxu0
    %v141 = vadd.f32 %v102, %v140
    %142 = vmatmul.f32.gmra.mxu0 %v50
    %v143 = vpop.f32.mrf.mxu0
    %v144 = vadd.f32 %v102, %v143
    %145 = vmatmul.f32.gmra.mxu0 %v51
    %v146 = vpop.f32.mrf.mxu0
    %v147 = vadd.f32 %v102, %v146
    %148 = vdwg.mxu0
    %149 = vmatpush.msra.mxu0 %v98
    %150 = vmatpush.msra.mxu0 %v95
    %151 = vmatpush.msra.mxu0 %v92
    %152 = vmatpush.msra.mxu0 %v89
    %153 = vmatpush.msra.mxu0 %v86
    %154 = vmatpush.msra.mxu0 %v83
    %155 = vmatpush.msra.mxu0 %v80
    %156 = vmatpush.msra.mxu0 %v77
    %157 = vmatpush.msra.mxu0 %v74
    %158 = vmatpush.msra.mxu0 %v71
    %159 = vmatpush.msra.mxu0 %v68
    %160 = vmatpush.msra.mxu0 %v65
    %161 = vmatpush.msra.mxu0 %v62
    %162 = vmatpush.msra.mxu0 %v59
    %163 = vmatpush.msra.mxu0 %v56
    %164 = vmatpush.msra.mxu0 %v53
    %165 = vmatmul.f32.gmra.mxu0 %v44
    %v166 = vpop.f32.mrf.mxu0
    %v167 = vadd.f32 %v103, %v166
    %168 = vmatmul.f32.gmra.mxu0 %v45
    %v169 = vpop.f32.mrf.mxu0
    %v170 = vadd.f32 %v103, %v169
    %171 = vmatmul.f32.gmra.mxu0 %v46
    %v172 = vpop.f32.mrf.mxu0
    %v173 = vadd.f32 %v103, %v172
    %174 = vmatmul.f32.gmra.mxu0 %v47
    %v175 = vpop.f32.mrf.mxu0
    %v176 = vadd.f32 %v103, %v175
    %177 = vmatmul.f32.gmra.mxu0 %v48
    %v178 = vpop.f32.mrf.mxu0
    %v179 = vadd.f32 %v103, %v178
    %180 = vmatmul.f32.gmra.mxu0 %v49
    %v181 = vpop.f32.mrf.mxu0
    %v182 = vadd.f32 %v103, %v181
    %183 = vmatmul.f32.gmra.mxu0 %v50
    %v184 = vpop.f32.mrf.mxu0
    %v185 = vadd.f32 %v103, %v184
    %186 = vmatmul.f32.gmra.mxu0 %v51
    %v187 = vpop.f32.mrf.mxu0
    %v188 = vadd.f32 %v103, %v187
    %189 = vdwg.mxu0
    %190 = vmatpush.msra.mxu0 %v99
    %191 = vmatpush.msra.mxu0 %v96
    %192 = vmatpush.msra.mxu0 %v93
    %193 = vmatpush.msra.mxu0 %v90
    %194 = vmatpush.msra.mxu0 %v87
    %195 = vmatpush.msra.mxu0 %v84
    %196 = vmatpush.msra.mxu0 %v81
    %197 = vmatpush.msra.mxu0 %v78
    %198 = vmatpush.msra.mxu0 %v75
    %199 = vmatpush.msra.mxu0 %v72
    %200 = vmatpush.msra.mxu0 %v69
    %201 = vmatpush.msra.mxu0 %v66
    %202 = vmatpush.msra.mxu0 %v63
    %203 = vmatpush.msra.mxu0 %v60
    %204 = vmatpush.msra.mxu0 %v57
    %205 = vmatpush.msra.mxu0 %v54
    %206 = vmatmul.f32.gmra.mxu0 %v44
    %v207 = vpop.f32.mrf.mxu0
    %v208 = vadd.f32 %v104, %v207
    %209 = vmatmul.f32.gmra.mxu0 %v45
    %v210 = vpop.f32.mrf.mxu0
    %v211 = vadd.f32 %v104, %v210
    %212 = vmatmul.f32.gmra.mxu0 %v46
    %v213 = vpop.f32.mrf.mxu0
    %v214 = vadd.f32 %v104, %v213
    %215 = vmatmul.f32.gmra.mxu0 %v47
    %v216 = vpop.f32.mrf.mxu0
    %v217 = vadd.f32 %v104, %v216
    %218 = vmatmul.f32.gmra.mxu0 %v48
    %v219 = vpop.f32.mrf.mxu0
    %v220 = vadd.f32 %v104, %v219
    %221 = vmatmul.f32.gmra.mxu0 %v49
    %v222 = vpop.f32.mrf.mxu0
    %v223 = vadd.f32 %v104, %v222
    %224 = vmatmul.f32.gmra.mxu0 %v50
    %v225 = vpop.f32.mrf.mxu0
    %v226 = vadd.f32 %v104, %v225
    %227 = vmatmul.f32.gmra.mxu0 %v51
    %v228 = vpop.f32.mrf.mxu0
    %v229 = vadd.f32 %v104, %v228
    %230 = vdwg.mxu0
    %231 = vst [vmem:[#allocation2] sm:$0xff] %v126
    %232 = vst [vmem:[#allocation2 + $0x8] sm:$0xff] %v167
    %233 = vst [vmem:[#allocation2 + $0x10] sm:$0xff] %v208
    %234 = vst [vmem:[#allocation2 + $0x18] sm:$0xff] %v129
    %235 = vst [vmem:[#allocation2 + $0x20] sm:$0xff] %v170
    %236 = vst [vmem:[#allocation2 + $0x28] sm:$0xff] %v211
    %237 = vst [vmem:[#allocation2 + $0x30] sm:$0xff] %v132
    %238 = vst [vmem:[#allocation2 + $0x38] sm:$0xff] %v173
    %239 = vst [vmem:[#allocation2 + $0x40] sm:$0xff] %v214
    %240 = vst [vmem:[#allocation2 + $0x48] sm:$0xff] %v135
    %241 = vst [vmem:[#allocation2 + $0x50] sm:$0xff] %v176
    %242 = vst [vmem:[#allocation2 + $0x58] sm:$0xff] %v217
    %243 = vst [vmem:[#allocation2 + $0x60] sm:$0xff] %v138
    %244 = vst [vmem:[#allocation2 + $0x68] sm:$0xff] %v179
    %245 = vst [vmem:[#allocation2 + $0x70] sm:$0xff] %v220
    %246 = vst [vmem:[#allocation2 + $0x78] sm:$0xff] %v141
    %247 = vst [vmem:[#allocation2 + $0x80] sm:$0xff] %v182
    %248 = vst [vmem:[#allocation2 + $0x88] sm:$0xff] %v223
    %249 = vst [vmem:[#allocation2 + $0x90] sm:$0xff] %v144
    %250 = vst [vmem:[#allocation2 + $0x98] sm:$0xff] %v185
    %251 = vst [vmem:[#allocation2 + $0xa0] sm:$0xff] %v226
    %252 = vst [vmem:[#allocation2 + $0xa8] sm:$0xff] %v147
    %253 = vst [vmem:[#allocation2 + $0xb0] sm:$0xff] %v188
    %254 = vst [vmem:[#allocation2 + $0xb8] sm:$0xff] %v229
    %v255 = vld [vmem:[%s4] sm:$0x1]
    %v257 = vperm.slane %v255, 0
    %v259 = vld [vmem:[#allocation2 + $0xa8] sm:$0xff]
    %v260 = vld [vmem:[#allocation2 + $0xb0] sm:$0xff]
    %v261 = vld [vmem:[#allocation2 + $0xb8] sm:$0xff]
    %v262 = vxor.u32 %v259, 2147483648
    %v263 = vxor.u32 %v260, 2147483648
    %v264 = vmul.f32 %v262, 1.442695
    %v265 = vpow.pop %v264
    %v266 = vmul.f32 %v263, 1.442695
    %v267 = vpow.pop %v266
    %v268 = vadd.f32 %v265, 1.0
    %v269 = vadd.f32 %v267, 1.0
    %v270 = vrcp.pop %v268
    %v271 = vmul.f32 %v268, %v270
    %v272 = vsub.f32 1.0, %v271
    %v273 = vmul.f32 %v270, %v272
    %v274 = vadd.f32 %v270, %v273
    %vm275 = vweird.f32 %v268
    %vm276 = vweird.f32 %v270
    %vm277 = vmor %vm275, %vm276
    %v278 = vsel %vm277, %v270, %v274
    %v279 = vand.u32 2147483647, %v268
    %vm280 = vcmp.eq.f32.partialorder %v279, 8.507059e+37
    %v281 = vand.u32 %v268, 2147483648
    %v282 = vor.u32 1.1754944e-38, %v281
    %v283 = vsel %vm280, %v282, %v278
    %v284 = vmul.f32 1.0, %v283
    %v285 = vrcp.pop %v269
    %v286 = vmul.f32 %v269, %v285
    %v287 = vsub.f32 1.0, %v286
    %v288 = vmul.f32 %v285, %v287
    %v289 = vadd.f32 %v285, %v288
    %vm290 = vweird.f32 %v269
    %vm291 = vweird.f32 %v285
    %vm292 = vmor %vm290, %vm291
    %v293 = vsel %vm292, %v285, %v289
    %v294 = vand.u32 2147483647, %v269
    %vm295 = vcmp.eq.f32.partialorder %v294, 8.507059e+37
    %v296 = vand.u32 %v269, 2147483648
    %v297 = vor.u32 1.1754944e-38, %v296
    %v298 = vsel %vm295, %v297, %v293
    %v299 = vmul.f32 1.0, %v298
    %v300 = vmul.f32 %v284, %v257
    %v301 = vadd.f32 %v261, %v300
    %v302 = vtanh.pop %v301
    %v303 = vmul.f32 %v299, %v302
    %v304 = vsub.f32 %v302, %v303
    %v305 = vld [vmem:[#allocation2 + $0x90] sm:$0xff]
    %v306 = vld [vmem:[#allocation2 + $0x98] sm:$0xff]
    %v307 = vld [vmem:[#allocation2 + $0xa0] sm:$0xff]
    %v308 = vld [vmem:[#allocation3] sm:$0xff]
    %v309 = vld [vmem:[#allocation3 + $0x8] sm:$0xff]
    %v310 = vld [vmem:[#allocation3 + $0x10] sm:$0xff]
    %v311 = vld [vmem:[#allocation3 + $0x18] sm:$0xff]
    %v312 = vld [vmem:[#allocation3 + $0x20] sm:$0xff]
    %v313 = vld [vmem:[#allocation3 + $0x28] sm:$0xff]
    %v314 = vld [vmem:[#allocation3 + $0x30] sm:$0xff]
    %v315 = vld [vmem:[#allocation3 + $0x38] sm:$0xff]
    %v316 = vld [vmem:[#allocation3 + $0x40] sm:$0xff]
    %v317 = vld [vmem:[#allocation3 + $0x48] sm:$0xff]
    %v318 = vld [vmem:[#allocation3 + $0x50] sm:$0xff]
    %v319 = vld [vmem:[#allocation3 + $0x58] sm:$0xff]
    %v320 = vld [vmem:[#allocation3 + $0x60] sm:$0xff]
    %v321 = vld [vmem:[#allocation3 + $0x68] sm:$0xff]
    %v322 = vld [vmem:[#allocation3 + $0x70] sm:$0xff]
    %v323 = vld [vmem:[#allocation3 + $0x78] sm:$0xff]
    %v324 = vld [vmem:[#allocation3 + $0x80] sm:$0xff]
    %v325 = vld [vmem:[#allocation3 + $0x88] sm:$0xff]
    %v326 = vld [vmem:[#allocation3 + $0x90] sm:$0xff]
    %v327 = vld [vmem:[#allocation3 + $0x98] sm:$0xff]
    %v328 = vld [vmem:[#allocation3 + $0xa0] sm:$0xff]
    %v329 = vld [vmem:[#allocation3 + $0xa8] sm:$0xff]
    %v330 = vld [vmem:[#allocation3 + $0xb0] sm:$0xff]
    %v331 = vld [vmem:[#allocation3 + $0xb8] sm:$0xff]
    %v332 = vld [vmem:[#allocation3 + $0xc0] sm:$0xff]
    %v333 = vld [vmem:[#allocation3 + $0xc8] sm:$0xff]
    %v334 = vld [vmem:[#allocation3 + $0xd0] sm:$0xff]
    %v335 = vld [vmem:[#allocation3 + $0xd8] sm:$0xff]
    %v336 = vld [vmem:[#allocation3 + $0xe0] sm:$0xff]
    %v337 = vld [vmem:[#allocation3 + $0xe8] sm:$0xff]
    %v338 = vld [vmem:[#allocation3 + $0xf0] sm:$0xff]
    %v339 = vld [vmem:[#allocation3 + $0xf8] sm:$0xff]
    %v340 = vld [vmem:[#allocation3 + $0x100] sm:$0xff]
    %v341 = vld [vmem:[#allocation3 + $0x108] sm:$0xff]
    %v342 = vld [vmem:[#allocation3 + $0x110] sm:$0xff]
    %v343 = vld [vmem:[#allocation3 + $0x118] sm:$0xff]
    %v344 = vld [vmem:[#allocation3 + $0x120] sm:$0xff]
    %v345 = vld [vmem:[#allocation3 + $0x128] sm:$0xff]
    %v346 = vld [vmem:[#allocation3 + $0x130] sm:$0xff]
    %v347 = vld [vmem:[#allocation3 + $0x138] sm:$0xff]
    %v348 = vld [vmem:[#allocation3 + $0x140] sm:$0xff]
    %v349 = vld [vmem:[#allocation3 + $0x148] sm:$0xff]
    %v350 = vld [vmem:[#allocation3 + $0x150] sm:$0xff]
    %v351 = vld [vmem:[#allocation3 + $0x158] sm:$0xff]
    %v352 = vld [vmem:[#allocation3 + $0x160] sm:$0xff]
    %v353 = vld [vmem:[#allocation3 + $0x168] sm:$0xff]
    %v354 = vld [vmem:[#allocation3 + $0x170] sm:$0xff]
    %v355 = vld [vmem:[#allocation3 + $0x178] sm:$0xff]
    %356 = vmatpush.msra.mxu0 %v353
    %357 = vmatpush.msra.mxu0 %v350
    %358 = vmatpush.msra.mxu0 %v347
    %359 = vmatpush.msra.mxu0 %v344
    %360 = vmatpush.msra.mxu0 %v341
    %361 = vmatpush.msra.mxu0 %v338
    %362 = vmatpush.msra.mxu0 %v335
    %363 = vmatpush.msra.mxu0 %v332
    %364 = vmatpush.msra.mxu0 %v329
    %365 = vmatpush.msra.mxu0 %v326
    %366 = vmatpush.msra.mxu0 %v323
    %367 = vmatpush.msra.mxu0 %v320
    %368 = vmatpush.msra.mxu0 %v317
    %369 = vmatpush.msra.mxu0 %v314
    %370 = vmatpush.msra.mxu0 %v311
    %371 = vmatpush.msra.mxu0 %v308
    %372 = vmatmul.f32.gmra.mxu0 %v304
    %v373 = vpop.f32.mrf.mxu0
    %v374 = vadd.f32 0.0, %v373
    %375 = vdwg.mxu0
    %376 = vmatpush.msra.mxu0 %v354
    %377 = vmatpush.msra.mxu0 %v351
    %378 = vmatpush.msra.mxu0 %v348
    %379 = vmatpush.msra.mxu0 %v345
    %380 = vmatpush.msra.mxu0 %v342
    %381 = vmatpush.msra.mxu0 %v339
    %382 = vmatpush.msra.mxu0 %v336
    %383 = vmatpush.msra.mxu0 %v333
    %384 = vmatpush.msra.mxu0 %v330
    %385 = vmatpush.msra.mxu0 %v327
    %386 = vmatpush.msra.mxu0 %v324
    %387 = vmatpush.msra.mxu0 %v321
    %388 = vmatpush.msra.mxu0 %v318
    %389 = vmatpush.msra.mxu0 %v315
    %390 = vmatpush.msra.mxu0 %v312
    %391 = vmatpush.msra.mxu0 %v309
    %392 = vmatmul.f32.gmra.mxu0 %v304
    %v393 = vpop.f32.mrf.mxu0
    %v394 = vadd.f32 0.0, %v393
    %395 = vdwg.mxu0
    %396 = vmatpush.msra.mxu0 %v355
    %397 = vmatpush.msra.mxu0 %v352
    %398 = vmatpush.msra.mxu0 %v349
    %399 = vmatpush.msra.mxu0 %v346
    %400 = vmatpush.msra.mxu0 %v343
    %401 = vmatpush.msra.mxu0 %v340
    %402 = vmatpush.msra.mxu0 %v337
    %403 = vmatpush.msra.mxu0 %v334
    %404 = vmatpush.msra.mxu0 %v331
    %405 = vmatpush.msra.mxu0 %v328
    %406 = vmatpush.msra.mxu0 %v325
    %407 = vmatpush.msra.mxu0 %v322
    %408 = vmatpush.msra.mxu0 %v319
    %409 = vmatpush.msra.mxu0 %v316
    %410 = vmatpush.msra.mxu0 %v313
    %411 = vmatpush.msra.mxu0 %v310
    %412 = vmatmul.f32.gmra.mxu0 %v304
    %v413 = vpop.f32.mrf.mxu0
    %v414 = vadd.f32 0.0, %v413
    %415 = vdwg.mxu0
    %v416 = vadd.f32 %v305, %v374
    %v417 = vadd.f32 %v306, %v394
    %v418 = vxor.u32 %v416, 2147483648
    %v419 = vxor.u32 %v417, 2147483648
    %v420 = vmul.f32 %v418, 1.442695
    %v421 = vpow.pop %v420
    %v422 = vmul.f32 %v419, 1.442695
    %v423 = vpow.pop %v422
    %v424 = vadd.f32 %v421, 1.0
    %v425 = vadd.f32 %v423, 1.0
    %v426 = vrcp.pop %v424
    %v427 = vmul.f32 %v424, %v426
    %v428 = vsub.f32 1.0, %v427
    %v429 = vmul.f32 %v426, %v428
    %v430 = vadd.f32 %v426, %v429
    %vm431 = vweird.f32 %v424
    %vm432 = vweird.f32 %v426
    %vm433 = vmor %vm431, %vm432
    %v434 = vsel %vm433, %v426, %v430
    %v435 = vand.u32 2147483647, %v424
    %vm436 = vcmp.eq.f32.partialorder %v435, 8.507059e+37
    %v437 = vand.u32 %v424, 2147483648
    %v438 = vor.u32 1.1754944e-38, %v437
    %v439 = vsel %vm436, %v438, %v434
    %v440 = vmul.f32 1.0, %v439
    %v441 = vrcp.pop %v425
    %v442 = vmul.f32 %v425, %v441
    %v443 = vsub.f32 1.0, %v442
    %v444 = vmul.f32 %v441, %v443
    %v445 = vadd.f32 %v441, %v444
    %vm446 = vweird.f32 %v425
    %vm447 = vweird.f32 %v441
    %vm448 = vmor %vm446, %vm447
    %v449 = vsel %vm448, %v441, %v445
    %v450 = vand.u32 2147483647, %v425
    %vm451 = vcmp.eq.f32.partialorder %v450, 8.507059e+37
    %v452 = vand.u32 %v425, 2147483648
    %v453 = vor.u32 1.1754944e-38, %v452
    %v454 = vsel %vm451, %v453, %v449
    %v455 = vmul.f32 1.0, %v454
    %v456 = vadd.f32 %v414, %v257
    %v457 = vmul.f32 %v440, %v456
    %v458 = vadd.f32 %v307, %v457
    %v459 = vtanh.pop %v458
    %v460 = vsub.f32 %v304, %v459
    %v461 = vmul.f32 %v455, %v460
    %v462 = vadd.f32 %v459, %v461
    %v463 = vld [vmem:[#allocation2 + $0x78] sm:$0xff]
    %v464 = vld [vmem:[#allocation2 + $0x80] sm:$0xff]
    %v465 = vld [vmem:[#allocation2 + $0x88] sm:$0xff]
    %466 = vmatpush.msra.mxu0 %v353
    %467 = vmatpush.msra.mxu0 %v350
    %468 = vmatpush.msra.mxu0 %v347
    %469 = vmatpush.msra.mxu0 %v344
    %470 = vmatpush.msra.mxu0 %v341
    %471 = vmatpush.msra.mxu0 %v338
    %472 = vmatpush.msra.mxu0 %v335
    %473 = vmatpush.msra.mxu0 %v332
    %474 = vmatpush.msra.mxu0 %v329
    %475 = vmatpush.msra.mxu0 %v326
    %476 = vmatpush.msra.mxu0 %v323
    %477 = vmatpush.msra.mxu0 %v320
    %478 = vmatpush.msra.mxu0 %v317
    %479 = vmatpush.msra.mxu0 %v314
    %480 = vmatpush.msra.mxu0 %v311
    %481 = vmatpush.msra.mxu0 %v308
    %482 = vmatmul.f32.gmra.mxu0 %v462
    %v483 = vpop.f32.mrf.mxu0
    %v484 = vadd.f32 0.0, %v483
    %485 = vdwg.mxu0
    %486 = vmatpush.msra.mxu0 %v354
    %487 = vmatpush.msra.mxu0 %v351
    %488 = vmatpush.msra.mxu0 %v348
    %489 = vmatpush.msra.mxu0 %v345
    %490 = vmatpush.msra.mxu0 %v342
    %491 = vmatpush.msra.mxu0 %v339
    %492 = vmatpush.msra.mxu0 %v336
    %493 = vmatpush.msra.mxu0 %v333
    %494 = vmatpush.msra.mxu0 %v330
    %495 = vmatpush.msra.mxu0 %v327
    %496 = vmatpush.msra.mxu0 %v324
    %497 = vmatpush.msra.mxu0 %v321
    %498 = vmatpush.msra.mxu0 %v318
    %499 = vmatpush.msra.mxu0 %v315
    %500 = vmatpush.msra.mxu0 %v312
    %501 = vmatpush.msra.mxu0 %v309
    %502 = vmatmul.f32.gmra.mxu0 %v462
    %v503 = vpop.f32.mrf.mxu0
    %v504 = vadd.f32 0.0, %v503
    %505 = vdwg.mxu0
    %506 = vmatpush.msra.mxu0 %v355
    %507 = vmatpush.msra.mxu0 %v352
    %508 = vmatpush.msra.mxu0 %v349
    %509 = vmatpush.msra.mxu0 %v346
    %510 = vmatpush.msra.mxu0 %v343
    %511 = vmatpush.msra.mxu0 %v340
    %512 = vmatpush.msra.mxu0 %v337
    %513 = vmatpush.msra.mxu0 %v334
    %514 = vmatpush.msra.mxu0 %v331
    %515 = vmatpush.msra.mxu0 %v328
    %516 = vmatpush.msra.mxu0 %v325
    %517 = vmatpush.msra.mxu0 %v322
    %518 = vmatpush.msra.mxu0 %v319
    %519 = vmatpush.msra.mxu0 %v316
    %520 = vmatpush.msra.mxu0 %v313
    %521 = vmatpush.msra.mxu0 %v310
    %522 = vmatmul.f32.gmra.mxu0 %v462
    %v523 = vpop.f32.mrf.mxu0
    %v524 = vadd.f32 0.0, %v523
    %525 = vdwg.mxu0
    %v526 = vadd.f32 %v463, %v484
    %v527 = vadd.f32 %v464, %v504
    %v528 = vxor.u32 %v526, 2147483648
    %v529 = vxor.u32 %v527, 2147483648
    %v530 = vmul.f32 %v528, 1.442695
    %v531 = vpow.pop %v530
    %v532 = vmul.f32 %v529, 1.442695
    %v533 = vpow.pop %v532
    %v534 = vadd.f32 %v531, 1.0
    %v535 = vadd.f32 %v533, 1.0
    %v536 = vrcp.pop %v534
    %v537 = vmul.f32 %v534, %v536
    %v538 = vsub.f32 1.0, %v537
    %v539 = vmul.f32 %v536, %v538
    %v540 = vadd.f32 %v536, %v539
    %vm541 = vweird.f32 %v534
    %vm542 = vweird.f32 %v536
    %vm543 = vmor %vm541, %vm542
    %v544 = vsel %vm543, %v536, %v540
    %v545 = vand.u32 2147483647, %v534
    %vm546 = vcmp.eq.f32.partialorder %v545, 8.507059e+37
    %v547 = vand.u32 %v534, 2147483648
    %v548 = vor.u32 1.1754944e-38, %v547
    %v549 = vsel %vm546, %v548, %v544
    %v550 = vmul.f32 1.0, %v549
    %v551 = vrcp.pop %v535
    %v552 = vmul.f32 %v535, %v551
    %v553 = vsub.f32 1.0, %v552
    %v554 = vmul.f32 %v551, %v553
    %v555 = vadd.f32 %v551, %v554
    %vm556 = vweird.f32 %v535
    %vm557 = vweird.f32 %v551
    %vm558 = vmor %vm556, %vm557
    %v559 = vsel %vm558, %v551, %v555
    %v560 = vand.u32 2147483647, %v535
    %vm561 = vcmp.eq.f32.partialorder %v560, 8.507059e+37
    %v562 = vand.u32 %v535, 2147483648
    %v563 = vor.u32 1.1754944e-38, %v562
    %v564 = vsel %vm561, %v563, %v559
    %v565 = vmul.f32 1.0, %v564
    %v566 = vadd.f32 %v524, %v257
    %v567 = vmul.f32 %v550, %v566
    %v568 = vadd.f32 %v465, %v567
    %v569 = vtanh.pop %v568
    %v570 = vsub.f32 %v462, %v569
    %v571 = vmul.f32 %v565, %v570
    %v572 = vadd.f32 %v569, %v571
    %v573 = vld [vmem:[#allocation2 + $0x60] sm:$0xff]
    %v574 = vld [vmem:[#allocation2 + $0x68] sm:$0xff]
    %v575 = vld [vmem:[#allocation2 + $0x70] sm:$0xff]
    %576 = vmatpush.msra.mxu0 %v353
    %577 = vmatpush.msra.mxu0 %v350
    %578 = vmatpush.msra.mxu0 %v347
    %579 = vmatpush.msra.mxu0 %v344
    %580 = vmatpush.msra.mxu0 %v341
    %581 = vmatpush.msra.mxu0 %v338
    %582 = vmatpush.msra.mxu0 %v335
    %583 = vmatpush.msra.mxu0 %v332
    %584 = vmatpush.msra.mxu0 %v329
    %585 = vmatpush.msra.mxu0 %v326
    %586 = vmatpush.msra.mxu0 %v323
    %587 = vmatpush.msra.mxu0 %v320
    %588 = vmatpush.msra.mxu0 %v317
    %589 = vmatpush.msra.mxu0 %v314
    %590 = vmatpush.msra.mxu0 %v311
    %591 = vmatpush.msra.mxu0 %v308
    %592 = vmatmul.f32.gmra.mxu0 %v572
    %v593 = vpop.f32.mrf.mxu0
    %v594 = vadd.f32 0.0, %v593
    %595 = vdwg.mxu0
    %596 = vmatpush.msra.mxu0 %v354
    %597 = vmatpush.msra.mxu0 %v351
    %598 = vmatpush.msra.mxu0 %v348
    %599 = vmatpush.msra.mxu0 %v345
    %600 = vmatpush.msra.mxu0 %v342
    %601 = vmatpush.msra.mxu0 %v339
    %602 = vmatpush.msra.mxu0 %v336
    %603 = vmatpush.msra.mxu0 %v333
    %604 = vmatpush.msra.mxu0 %v330
    %605 = vmatpush.msra.mxu0 %v327
    %606 = vmatpush.msra.mxu0 %v324
    %607 = vmatpush.msra.mxu0 %v321
    %608 = vmatpush.msra.mxu0 %v318
    %609 = vmatpush.msra.mxu0 %v315
    %610 = vmatpush.msra.mxu0 %v312
    %611 = vmatpush.msra.mxu0 %v309
    %612 = vmatmul.f32.gmra.mxu0 %v572
    %v613 = vpop.f32.mrf.mxu0
    %v614 = vadd.f32 0.0, %v613
    %615 = vdwg.mxu0
    %616 = vmatpush.msra.mxu0 %v355
    %617 = vmatpush.msra.mxu0 %v352
    %618 = vmatpush.msra.mxu0 %v349
    %619 = vmatpush.msra.mxu0 %v346
    %620 = vmatpush.msra.mxu0 %v343
    %621 = vmatpush.msra.mxu0 %v340
    %622 = vmatpush.msra.mxu0 %v337
    %623 = vmatpush.msra.mxu0 %v334
    %624 = vmatpush.msra.mxu0 %v331
    %625 = vmatpush.msra.mxu0 %v328
    %626 = vmatpush.msra.mxu0 %v325
    %627 = vmatpush.msra.mxu0 %v322
    %628 = vmatpush.msra.mxu0 %v319
    %629 = vmatpush.msra.mxu0 %v316
    %630 = vmatpush.msra.mxu0 %v313
    %631 = vmatpush.msra.mxu0 %v310
    %632 = vmatmul.f32.gmra.mxu0 %v572
    %v633 = vpop.f32.mrf.mxu0
    %v634 = vadd.f32 0.0, %v633
    %635 = vdwg.mxu0
    %v636 = vadd.f32 %v573, %v594
    %v637 = vadd.f32 %v574, %v614
    %v638 = vxor.u32 %v636, 2147483648
    %v639 = vxor.u32 %v637, 2147483648
    %v640 = vmul.f32 %v638, 1.442695
    %v641 = vpow.pop %v640
    %v642 = vmul.f32 %v639, 1.442695
    %v643 = vpow.pop %v642
    %v644 = vadd.f32 %v641, 1.0
    %v645 = vadd.f32 %v643, 1.0
    %v646 = vrcp.pop %v644
    %v647 = vmul.f32 %v644, %v646
    %v648 = vsub.f32 1.0, %v647
    %v649 = vmul.f32 %v646, %v648
    %v650 = vadd.f32 %v646, %v649
    %vm651 = vweird.f32 %v644
    %vm652 = vweird.f32 %v646
    %vm653 = vmor %vm651, %vm652
    %v654 = vsel %vm653, %v646, %v650
    %v655 = vand.u32 2147483647, %v644
    %vm656 = vcmp.eq.f32.partialorder %v655, 8.507059e+37
    %v657 = vand.u32 %v644, 2147483648
    %v658 = vor.u32 1.1754944e-38, %v657
    %v659 = vsel %vm656, %v658, %v654
    %v660 = vmul.f32 1.0, %v659
    %v661 = vrcp.pop %v645
    %v662 = vmul.f32 %v645, %v661
    %v663 = vsub.f32 1.0, %v662
    %v664 = vmul.f32 %v661, %v663
    %v665 = vadd.f32 %v661, %v664
    %vm666 = vweird.f32 %v645
    %vm667 = vweird.f32 %v661
    %vm668 = vmor %vm666, %vm667
    %v669 = vsel %vm668, %v661, %v665
    %v670 = vand.u32 2147483647, %v645
    %vm671 = vcmp.eq.f32.partialorder %v670, 8.507059e+37
    %v672 = vand.u32 %v645, 2147483648
    %v673 = vor.u32 1.1754944e-38, %v672
    %v674 = vsel %vm671, %v673, %v669
    %v675 = vmul.f32 1.0, %v674
    %v676 = vadd.f32 %v634, %v257
    %v677 = vmul.f32 %v660, %v676
    %v678 = vadd.f32 %v575, %v677
    %v679 = vtanh.pop %v678
    %v680 = vsub.f32 %v572, %v679
    %v681 = vmul.f32 %v675, %v680
    %v682 = vadd.f32 %v679, %v681
    %v683 = vld [vmem:[#allocation2 + $0x48] sm:$0xff]
    %v684 = vld [vmem:[#allocation2 + $0x50] sm:$0xff]
    %v685 = vld [vmem:[#allocation2 + $0x58] sm:$0xff]
    %686 = vmatpush.msra.mxu0 %v353
    %687 = vmatpush.msra.mxu0 %v350
    %688 = vmatpush.msra.mxu0 %v347
    %689 = vmatpush.msra.mxu0 %v344
    %690 = vmatpush.msra.mxu0 %v341
    %691 = vmatpush.msra.mxu0 %v338
    %692 = vmatpush.msra.mxu0 %v335
    %693 = vmatpush.msra.mxu0 %v332
    %694 = vmatpush.msra.mxu0 %v329
    %695 = vmatpush.msra.mxu0 %v326
    %696 = vmatpush.msra.mxu0 %v323
    %697 = vmatpush.msra.mxu0 %v320
    %698 = vmatpush.msra.mxu0 %v317
    %699 = vmatpush.msra.mxu0 %v314
    %700 = vmatpush.msra.mxu0 %v311
    %701 = vmatpush.msra.mxu0 %v308
    %702 = vmatmul.f32.gmra.mxu0 %v682
    %v703 = vpop.f32.mrf.mxu0
    %v704 = vadd.f32 0.0, %v703
    %705 = vdwg.mxu0
    %706 = vmatpush.msra.mxu0 %v354
    %707 = vmatpush.msra.mxu0 %v351
    %708 = vmatpush.msra.mxu0 %v348
    %709 = vmatpush.msra.mxu0 %v345
    %710 = vmatpush.msra.mxu0 %v342
    %711 = vmatpush.msra.mxu0 %v339
    %712 = vmatpush.msra.mxu0 %v336
    %713 = vmatpush.msra.mxu0 %v333
    %714 = vmatpush.msra.mxu0 %v330
    %715 = vmatpush.msra.mxu0 %v327
    %716 = vmatpush.msra.mxu0 %v324
    %717 = vmatpush.msra.mxu0 %v321
    %718 = vmatpush.msra.mxu0 %v318
    %719 = vmatpush.msra.mxu0 %v315
    %720 = vmatpush.msra.mxu0 %v312
    %721 = vmatpush.msra.mxu0 %v309
    %722 = vmatmul.f32.gmra.mxu0 %v682
    %v723 = vpop.f32.mrf.mxu0
    %v724 = vadd.f32 0.0, %v723
    %725 = vdwg.mxu0
    %726 = vmatpush.msra.mxu0 %v355
    %727 = vmatpush.msra.mxu0 %v352
    %728 = vmatpush.msra.mxu0 %v349
    %729 = vmatpush.msra.mxu0 %v346
    %730 = vmatpush.msra.mxu0 %v343
    %731 = vmatpush.msra.mxu0 %v340
    %732 = vmatpush.msra.mxu0 %v337
    %733 = vmatpush.msra.mxu0 %v334
    %734 = vmatpush.msra.mxu0 %v331
    %735 = vmatpush.msra.mxu0 %v328
    %736 = vmatpush.msra.mxu0 %v325
    %737 = vmatpush.msra.mxu0 %v322
    %738 = vmatpush.msra.mxu0 %v319
    %739 = vmatpush.msra.mxu0 %v316
    %740 = vmatpush.msra.mxu0 %v313
    %741 = vmatpush.msra.mxu0 %v310
    %742 = vmatmul.f32.gmra.mxu0 %v682
    %v743 = vpop.f32.mrf.mxu0
    %v744 = vadd.f32 0.0, %v743
    %745 = vdwg.mxu0
    %v746 = vadd.f32 %v683, %v704
    %v747 = vadd.f32 %v684, %v724
    %v748 = vxor.u32 %v746, 2147483648
    %v749 = vxor.u32 %v747, 2147483648
    %v750 = vmul.f32 %v748, 1.442695
    %v751 = vpow.pop %v750
    %v752 = vmul.f32 %v749, 1.442695
    %v753 = vpow.pop %v752
    %v754 = vadd.f32 %v751, 1.0
    %v755 = vadd.f32 %v753, 1.0
    %v756 = vrcp.pop %v754
    %v757 = vmul.f32 %v754, %v756
    %v758 = vsub.f32 1.0, %v757
    %v759 = vmul.f32 %v756, %v758
    %v760 = vadd.f32 %v756, %v759
    %vm761 = vweird.f32 %v754
    %vm762 = vweird.f32 %v756
    %vm763 = vmor %vm761, %vm762
    %v764 = vsel %vm763, %v756, %v760
    %v765 = vand.u32 2147483647, %v754
    %vm766 = vcmp.eq.f32.partialorder %v765, 8.507059e+37
    %v767 = vand.u32 %v754, 2147483648
    %v768 = vor.u32 1.1754944e-38, %v767
    %v769 = vsel %vm766, %v768, %v764
    %v770 = vmul.f32 1.0, %v769
    %v771 = vrcp.pop %v755
    %v772 = vmul.f32 %v755, %v771
    %v773 = vsub.f32 1.0, %v772
    %v774 = vmul.f32 %v771, %v773
    %v775 = vadd.f32 %v771, %v774
    %vm776 = vweird.f32 %v755
    %vm777 = vweird.f32 %v771
    %vm778 = vmor %vm776, %vm777
    %v779 = vsel %vm778, %v771, %v775
    %v780 = vand.u32 2147483647, %v755
    %vm781 = vcmp.eq.f32.partialorder %v780, 8.507059e+37
    %v782 = vand.u32 %v755, 2147483648
    %v783 = vor.u32 1.1754944e-38, %v782
    %v784 = vsel %vm781, %v783, %v779
    %v785 = vmul.f32 1.0, %v784
    %v786 = vadd.f32 %v744, %v257
    %v787 = vmul.f32 %v770, %v786
    %v788 = vadd.f32 %v685, %v787
    %v789 = vtanh.pop %v788
    %v790 = vsub.f32 %v682, %v789
    %v791 = vmul.f32 %v785, %v790
    %v792 = vadd.f32 %v789, %v791
    %v793 = vld [vmem:[#allocation2 + $0x30] sm:$0xff]
    %v794 = vld [vmem:[#allocation2 + $0x38] sm:$0xff]
    %v795 = vld [vmem:[#allocation2 + $0x40] sm:$0xff]
    %796 = vmatpush.msra.mxu0 %v353
    %797 = vmatpush.msra.mxu0 %v350
    %798 = vmatpush.msra.mxu0 %v347
    %799 = vmatpush.msra.mxu0 %v344
    %800 = vmatpush.msra.mxu0 %v341
    %801 = vmatpush.msra.mxu0 %v338
    %802 = vmatpush.msra.mxu0 %v335
    %803 = vmatpush.msra.mxu0 %v332
    %804 = vmatpush.msra.mxu0 %v329
    %805 = vmatpush.msra.mxu0 %v326
    %806 = vmatpush.msra.mxu0 %v323
    %807 = vmatpush.msra.mxu0 %v320
    %808 = vmatpush.msra.mxu0 %v317
    %809 = vmatpush.msra.mxu0 %v314
    %810 = vmatpush.msra.mxu0 %v311
    %811 = vmatpush.msra.mxu0 %v308
    %812 = vmatmul.f32.gmra.mxu0 %v792
    %v813 = vpop.f32.mrf.mxu0
    %v814 = vadd.f32 0.0, %v813
    %815 = vdwg.mxu0
    %816 = vmatpush.msra.mxu0 %v354
    %817 = vmatpush.msra.mxu0 %v351
    %818 = vmatpush.msra.mxu0 %v348
    %819 = vmatpush.msra.mxu0 %v345
    %820 = vmatpush.msra.mxu0 %v342
    %821 = vmatpush.msra.mxu0 %v339
    %822 = vmatpush.msra.mxu0 %v336
    %823 = vmatpush.msra.mxu0 %v333
    %824 = vmatpush.msra.mxu0 %v330
    %825 = vmatpush.msra.mxu0 %v327
    %826 = vmatpush.msra.mxu0 %v324
    %827 = vmatpush.msra.mxu0 %v321
    %828 = vmatpush.msra.mxu0 %v318
    %829 = vmatpush.msra.mxu0 %v315
    %830 = vmatpush.msra.mxu0 %v312
    %831 = vmatpush.msra.mxu0 %v309
    %832 = vmatmul.f32.gmra.mxu0 %v792
    %v833 = vpop.f32.mrf.mxu0
    %v834 = vadd.f32 0.0, %v833
    %835 = vdwg.mxu0
    %836 = vmatpush.msra.mxu0 %v355
    %837 = vmatpush.msra.mxu0 %v352
    %838 = vmatpush.msra.mxu0 %v349
    %839 = vmatpush.msra.mxu0 %v346
    %840 = vmatpush.msra.mxu0 %v343
    %841 = vmatpush.msra.mxu0 %v340
    %842 = vmatpush.msra.mxu0 %v337
    %843 = vmatpush.msra.mxu0 %v334
    %844 = vmatpush.msra.mxu0 %v331
    %845 = vmatpush.msra.mxu0 %v328
    %846 = vmatpush.msra.mxu0 %v325
    %847 = vmatpush.msra.mxu0 %v322
    %848 = vmatpush.msra.mxu0 %v319
    %849 = vmatpush.msra.mxu0 %v316
    %850 = vmatpush.msra.mxu0 %v313
    %851 = vmatpush.msra.mxu0 %v310
    %852 = vmatmul.f32.gmra.mxu0 %v792
    %v853 = vpop.f32.mrf.mxu0
    %v854 = vadd.f32 0.0, %v853
    %855 = vdwg.mxu0
    %v856 = vadd.f32 %v793, %v814
    %v857 = vadd.f32 %v794, %v834
    %v858 = vxor.u32 %v856, 2147483648
    %v859 = vxor.u32 %v857, 2147483648
    %v860 = vmul.f32 %v858, 1.442695
    %v861 = vpow.pop %v860
    %v862 = vmul.f32 %v859, 1.442695
    %v863 = vpow.pop %v862
    %v864 = vadd.f32 %v861, 1.0
    %v865 = vadd.f32 %v863, 1.0
    %v866 = vrcp.pop %v864
    %v867 = vmul.f32 %v864, %v866
    %v868 = vsub.f32 1.0, %v867
    %v869 = vmul.f32 %v866, %v868
    %v870 = vadd.f32 %v866, %v869
    %vm871 = vweird.f32 %v864
    %vm872 = vweird.f32 %v866
    %vm873 = vmor %vm871, %vm872
    %v874 = vsel %vm873, %v866, %v870
    %v875 = vand.u32 2147483647, %v864
    %vm876 = vcmp.eq.f32.partialorder %v875, 8.507059e+37
    %v877 = vand.u32 %v864, 2147483648
    %v878 = vor.u32 1.1754944e-38, %v877
    %v879 = vsel %vm876, %v878, %v874
    %v880 = vmul.f32 1.0, %v879
    %v881 = vrcp.pop %v865
    %v882 = vmul.f32 %v865, %v881
    %v883 = vsub.f32 1.0, %v882
    %v884 = vmul.f32 %v881, %v883
    %v885 = vadd.f32 %v881, %v884
    %vm886 = vweird.f32 %v865
    %vm887 = vweird.f32 %v881
    %vm888 = vmor %vm886, %vm887
    %v889 = vsel %vm888, %v881, %v885
    %v890 = vand.u32 2147483647, %v865
    %vm891 = vcmp.eq.f32.partialorder %v890, 8.507059e+37
    %v892 = vand.u32 %v865, 2147483648
    %v893 = vor.u32 1.1754944e-38, %v892
    %v894 = vsel %vm891, %v893, %v889
    %v895 = vmul.f32 1.0, %v894
    %v896 = vadd.f32 %v854, %v257
    %v897 = vmul.f32 %v880, %v896
    %v898 = vadd.f32 %v795, %v897
    %v899 = vtanh.pop %v898
    %v900 = vsub.f32 %v792, %v899
    %v901 = vmul.f32 %v895, %v900
    %v902 = vadd.f32 %v899, %v901
    %v903 = vld [vmem:[#allocation2 + $0x18] sm:$0xff]
    %v904 = vld [vmem:[#allocation2 + $0x20] sm:$0xff]
    %v905 = vld [vmem:[#allocation2 + $0x28] sm:$0xff]
    %906 = vmatpush.msra.mxu0 %v353
    %907 = vmatpush.msra.mxu0 %v350
    %908 = vmatpush.msra.mxu0 %v347
    %909 = vmatpush.msra.mxu0 %v344
    %910 = vmatpush.msra.mxu0 %v341
    %911 = vmatpush.msra.mxu0 %v338
    %912 = vmatpush.msra.mxu0 %v335
    %913 = vmatpush.msra.mxu0 %v332
    %914 = vmatpush.msra.mxu0 %v329
    %915 = vmatpush.msra.mxu0 %v326
    %916 = vmatpush.msra.mxu0 %v323
    %917 = vmatpush.msra.mxu0 %v320
    %918 = vmatpush.msra.mxu0 %v317
    %919 = vmatpush.msra.mxu0 %v314
    %920 = vmatpush.msra.mxu0 %v311
    %921 = vmatpush.msra.mxu0 %v308
    %922 = vmatmul.f32.gmra.mxu0 %v902
    %v923 = vpop.f32.mrf.mxu0
    %v924 = vadd.f32 0.0, %v923
    %925 = vdwg.mxu0
    %926 = vmatpush.msra.mxu0 %v354
    %927 = vmatpush.msra.mxu0 %v351
    %928 = vmatpush.msra.mxu0 %v348
    %929 = vmatpush.msra.mxu0 %v345
    %930 = vmatpush.msra.mxu0 %v342
    %931 = vmatpush.msra.mxu0 %v339
    %932 = vmatpush.msra.mxu0 %v336
    %933 = vmatpush.msra.mxu0 %v333
    %934 = vmatpush.msra.mxu0 %v330
    %935 = vmatpush.msra.mxu0 %v327
    %936 = vmatpush.msra.mxu0 %v324
    %937 = vmatpush.msra.mxu0 %v321
    %938 = vmatpush.msra.mxu0 %v318
    %939 = vmatpush.msra.mxu0 %v315
    %940 = vmatpush.msra.mxu0 %v312
    %941 = vmatpush.msra.mxu0 %v309
    %942 = vmatmul.f32.gmra.mxu0 %v902
    %v943 = vpop.f32.mrf.mxu0
    %v944 = vadd.f32 0.0, %v943
    %945 = vdwg.mxu0
    %946 = vmatpush.msra.mxu0 %v355
    %947 = vmatpush.msra.mxu0 %v352
    %948 = vmatpush.msra.mxu0 %v349
    %949 = vmatpush.msra.mxu0 %v346
    %950 = vmatpush.msra.mxu0 %v343
    %951 = vmatpush.msra.mxu0 %v340
    %952 = vmatpush.msra.mxu0 %v337
    %953 = vmatpush.msra.mxu0 %v334
    %954 = vmatpush.msra.mxu0 %v331
    %955 = vmatpush.msra.mxu0 %v328
    %956 = vmatpush.msra.mxu0 %v325
    %957 = vmatpush.msra.mxu0 %v322
    %958 = vmatpush.msra.mxu0 %v319
    %959 = vmatpush.msra.mxu0 %v316
    %960 = vmatpush.msra.mxu0 %v313
    %961 = vmatpush.msra.mxu0 %v310
    %962 = vmatmul.f32.gmra.mxu0 %v902
    %v963 = vpop.f32.mrf.mxu0
    %v964 = vadd.f32 0.0, %v963
    %965 = vdwg.mxu0
    %v966 = vadd.f32 %v903, %v924
    %v967 = vadd.f32 %v904, %v944
    %v968 = vxor.u32 %v966, 2147483648
    %v969 = vxor.u32 %v967, 2147483648
    %v970 = vmul.f32 %v968, 1.442695
    %v971 = vpow.pop %v970
    %v972 = vmul.f32 %v969, 1.442695
    %v973 = vpow.pop %v972
    %v974 = vadd.f32 %v971, 1.0
    %v975 = vadd.f32 %v973, 1.0
    %v976 = vrcp.pop %v974
    %v977 = vmul.f32 %v974, %v976
    %v978 = vsub.f32 1.0, %v977
    %v979 = vmul.f32 %v976, %v978
    %v980 = vadd.f32 %v976, %v979
    %vm981 = vweird.f32 %v974
    %vm982 = vweird.f32 %v976
    %vm983 = vmor %vm981, %vm982
    %v984 = vsel %vm983, %v976, %v980
    %v985 = vand.u32 2147483647, %v974
    %vm986 = vcmp.eq.f32.partialorder %v985, 8.507059e+37
    %v987 = vand.u32 %v974, 2147483648
    %v988 = vor.u32 1.1754944e-38, %v987
    %v989 = vsel %vm986, %v988, %v984
    %v990 = vmul.f32 1.0, %v989
    %v991 = vrcp.pop %v975
    %v992 = vmul.f32 %v975, %v991
    %v993 = vsub.f32 1.0, %v992
    %v994 = vmul.f32 %v991, %v993
    %v995 = vadd.f32 %v991, %v994
    %vm996 = vweird.f32 %v975
    %vm997 = vweird.f32 %v991
    %vm998 = vmor %vm996, %vm997
    %v999 = vsel %vm998, %v991, %v995
    %v1000 = vand.u32 2147483647, %v975
    %vm1001 = vcmp.eq.f32.partialorder %v1000, 8.507059e+37
    %v1002 = vand.u32 %v975, 2147483648
    %v1003 = vor.u32 1.1754944e-38, %v1002
    %v1004 = vsel %vm1001, %v1003, %v999
    %v1005 = vmul.f32 1.0, %v1004
    %v1006 = vadd.f32 %v964, %v257
    %v1007 = vmul.f32 %v990, %v1006
    %v1008 = vadd.f32 %v905, %v1007
    %v1009 = vtanh.pop %v1008
    %v1010 = vsub.f32 %v902, %v1009
    %v1011 = vmul.f32 %v1005, %v1010
    %v1012 = vadd.f32 %v1009, %v1011
    %v1013 = vld [vmem:[#allocation2] sm:$0xff]
    %v1014 = vld [vmem:[#allocation2 + $0x8] sm:$0xff]
    %v1015 = vld [vmem:[#allocation2 + $0x10] sm:$0xff]
    %1016 = vmatpush.msra.mxu0 %v353
    %1017 = vmatpush.msra.mxu0 %v350
    %1018 = vmatpush.msra.mxu0 %v347
    %1019 = vmatpush.msra.mxu0 %v344
    %1020 = vmatpush.msra.mxu0 %v341
    %1021 = vmatpush.msra.mxu0 %v338
    %1022 = vmatpush.msra.mxu0 %v335
    %1023 = vmatpush.msra.mxu0 %v332
    %1024 = vmatpush.msra.mxu0 %v329
    %1025 = vmatpush.msra.mxu0 %v326
    %1026 = vmatpush.msra.mxu0 %v323
    %1027 = vmatpush.msra.mxu0 %v320
    %1028 = vmatpush.msra.mxu0 %v317
    %1029 = vmatpush.msra.mxu0 %v314
    %1030 = vmatpush.msra.mxu0 %v311
    %1031 = vmatpush.msra.mxu0 %v308
    %1032 = vmatmul.f32.gmra.mxu0 %v1012
    %v1033 = vpop.f32.mrf.mxu0
    %v1034 = vadd.f32 0.0, %v1033
    %1035 = vdwg.mxu0
    %1036 = vmatpush.msra.mxu0 %v354
    %1037 = vmatpush.msra.mxu0 %v351
    %1038 = vmatpush.msra.mxu0 %v348
    %1039 = vmatpush.msra.mxu0 %v345
    %1040 = vmatpush.msra.mxu0 %v342
    %1041 = vmatpush.msra.mxu0 %v339
    %1042 = vmatpush.msra.mxu0 %v336
    %1043 = vmatpush.msra.mxu0 %v333
    %1044 = vmatpush.msra.mxu0 %v330
    %1045 = vmatpush.msra.mxu0 %v327
    %1046 = vmatpush.msra.mxu0 %v324
    %1047 = vmatpush.msra.mxu0 %v321
    %1048 = vmatpush.msra.mxu0 %v318
    %1049 = vmatpush.msra.mxu0 %v315
    %1050 = vmatpush.msra.mxu0 %v312
    %1051 = vmatpush.msra.mxu0 %v309
    %1052 = vmatmul.f32.gmra.mxu0 %v1012
    %v1053 = vpop.f32.mrf.mxu0
    %v1054 = vadd.f32 0.0, %v1053
    %1055 = vdwg.mxu0
    %1056 = vmatpush.msra.mxu0 %v355
    %1057 = vmatpush.msra.mxu0 %v352
    %1058 = vmatpush.msra.mxu0 %v349
    %1059 = vmatpush.msra.mxu0 %v346
    %1060 = vmatpush.msra.mxu0 %v343
    %1061 = vmatpush.msra.mxu0 %v340
    %1062 = vmatpush.msra.mxu0 %v337
    %1063 = vmatpush.msra.mxu0 %v334
    %1064 = vmatpush.msra.mxu0 %v331
    %1065 = vmatpush.msra.mxu0 %v328
    %1066 = vmatpush.msra.mxu0 %v325
    %1067 = vmatpush.msra.mxu0 %v322
    %1068 = vmatpush.msra.mxu0 %v319
    %1069 = vmatpush.msra.mxu0 %v316
    %1070 = vmatpush.msra.mxu0 %v313
    %1071 = vmatpush.msra.mxu0 %v310
    %1072 = vmatmul.f32.gmra.mxu0 %v1012
    %v1073 = vpop.f32.mrf.mxu0
    %v1074 = vadd.f32 0.0, %v1073
    %1075 = vdwg.mxu0
    %v1076 = vadd.f32 %v1013, %v1034
    %v1077 = vadd.f32 %v1014, %v1054
    %v1078 = vxor.u32 %v1076, 2147483648
    %v1079 = vxor.u32 %v1077, 2147483648
    %v1080 = vmul.f32 %v1078, 1.442695
    %v1081 = vpow.pop %v1080
    %v1082 = vmul.f32 %v1079, 1.442695
    %v1083 = vpow.pop %v1082
    %v1084 = vadd.f32 %v1081, 1.0
    %v1085 = vadd.f32 %v1083, 1.0
    %v1086 = vrcp.pop %v1084
    %v1087 = vmul.f32 %v1084, %v1086
    %v1088 = vsub.f32 1.0, %v1087
    %v1089 = vmul.f32 %v1086, %v1088
    %v1090 = vadd.f32 %v1086, %v1089
    %vm1091 = vweird.f32 %v1084
    %vm1092 = vweird.f32 %v1086
    %vm1093 = vmor %vm1091, %vm1092
    %v1094 = vsel %vm1093, %v1086, %v1090
    %v1095 = vand.u32 2147483647, %v1084
    %vm1096 = vcmp.eq.f32.partialorder %v1095, 8.507059e+37
    %v1097 = vand.u32 %v1084, 2147483648
    %v1098 = vor.u32 1.1754944e-38, %v1097
    %v1099 = vsel %vm1096, %v1098, %v1094
    %v1100 = vmul.f32 1.0, %v1099
    %v1101 = vrcp.pop %v1085
    %v1102 = vmul.f32 %v1085, %v1101
    %v1103 = vsub.f32 1.0, %v1102
    %v1104 = vmul.f32 %v1101, %v1103
    %v1105 = vadd.f32 %v1101, %v1104
    %vm1106 = vweird.f32 %v1085
    %vm1107 = vweird.f32 %v1101
    %vm1108 = vmor %vm1106, %vm1107
    %v1109 = vsel %vm1108, %v1101, %v1105
    %v1110 = vand.u32 2147483647, %v1085
    %vm1111 = vcmp.eq.f32.partialorder %v1110, 8.507059e+37
    %v1112 = vand.u32 %v1085, 2147483648
    %v1113 = vor.u32 1.1754944e-38, %v1112
    %v1114 = vsel %vm1111, %v1113, %v1109
    %v1115 = vmul.f32 1.0, %v1114
    %v1116 = vadd.f32 %v1074, %v257
    %v1117 = vmul.f32 %v1100, %v1116
    %v1118 = vadd.f32 %v1015, %v1117
    %v1119 = vtanh.pop %v1118
    %v1120 = vsub.f32 %v1012, %v1119
    %v1121 = vmul.f32 %v1115, %v1120
    %v1122 = vadd.f32 %v1119, %v1121
    %1123 = vst [vmem:[%s8] sm:$0xff] %v1122
    %v1124 = vld [vmem:[%s5] sm:$0xff]
    %v1125 = vld [vmem:[%s5 + $0x8] sm:$0xff]
    %v1126 = vld [vmem:[%s5 + $0x10] sm:$0xff]
    %v1127 = vld [vmem:[%s5 + $0x18] sm:$0xff]
    %v1128 = vld [vmem:[%s5 + $0x20] sm:$0xff]
    %v1129 = vld [vmem:[%s5 + $0x28] sm:$0xff]
    %v1130 = vld [vmem:[%s5 + $0x30] sm:$0xff]
    %v1131 = vld [vmem:[%s5 + $0x38] sm:$0xff]
    %v1132 = vld [vmem:[%s5 + $0x40] sm:$0xff]
    %v1133 = vld [vmem:[%s5 + $0x48] sm:$0xff]
    %v1134 = vld [vmem:[%s5 + $0x50] sm:$0xff]
    %v1135 = vld [vmem:[%s5 + $0x58] sm:$0xff]
    %v1136 = vld [vmem:[%s5 + $0x60] sm:$0xff]
    %v1137 = vld [vmem:[%s5 + $0x68] sm:$0xff]
    %v1138 = vld [vmem:[%s5 + $0x70] sm:$0xff]
    %v1139 = vld [vmem:[%s5 + $0x78] sm:$0xff]
    %v1140 = vld [vmem:[%s6] sm:$0x1]
    %v1142 = vperm.slane %v1140, 0
    %1144 = vmatpush.msra.mxu0 %v1139
    %1145 = vmatpush.msra.mxu0 %v1138
    %1146 = vmatpush.msra.mxu0 %v1137
    %1147 = vmatpush.msra.mxu0 %v1136
    %1148 = vmatpush.msra.mxu0 %v1135
    %1149 = vmatpush.msra.mxu0 %v1134
    %1150 = vmatpush.msra.mxu0 %v1133
    %1151 = vmatpush.msra.mxu0 %v1132
    %1152 = vmatpush.msra.mxu0 %v1131
    %1153 = vmatpush.msra.mxu0 %v1130
    %1154 = vmatpush.msra.mxu0 %v1129
    %1155 = vmatpush.msra.mxu0 %v1128
    %1156 = vmatpush.msra.mxu0 %v1127
    %1157 = vmatpush.msra.mxu0 %v1126
    %1158 = vmatpush.msra.mxu0 %v1125
    %1159 = vmatpush.msra.mxu0 %v1124
    %1160 = vmatmul.f32.gmra.mxu0 %v1122
    %v1161 = vpop.f32.mrf.mxu0
    %v1162 = vadd.f32 %v1142, %v1161
    %1163 = vdwg.mxu0
    %1164 = vst [vmem:[%s7] sm:$0xff] %v1162
    // Predicated region
    $region34: #{recognition_odegru_forward.1} parent=1 // pred_check
      _
    $region35: #{recognition_odegru_forward.1} parent=1 // pred_check_branch
      %1166 = sbr.rel (0) target = $region37
    $region36: #{recognition_odegru_forward.1} parent=1 // pred_region
      _
    $region37: #{recognition_odegru_forward.1} parent=1 // pred_fallthru
      _
    // Predicated region
    $region38: #{recognition_odegru_forward.1} parent=1 // pred_check
      _
    $region39: #{recognition_odegru_forward.1} parent=1 // pred_check_branch
      %1168 = sbr.rel (0) target = $region41
    $region40: #{recognition_odegru_forward.1} parent=1 // pred_region
      _
    $region41: #{recognition_odegru_forward.1} parent=1 // pred_fallthru
      _
    // Predicated region
    $region42: #{recognition_odegru_forward.1} parent=1 // pred_check
      _
    $region43: #{recognition_odegru_forward.1} parent=1 // pred_check_branch
      %1170 = sbr.rel (0) target = $region45
    $region44: #{recognition_odegru_forward.1} parent=1 // pred_region
      _
    $region45: #{recognition_odegru_forward.1} parent=1 // pred_fallthru
      _
    // Predicated region
    $region46: #{recognition_odegru_forward.1} parent=1 // pred_check
      _
    $region47: #{recognition_odegru_forward.1} parent=1 // pred_check_branch
      %1172 = sbr.rel (0) target = $region49
    $region48: #{recognition_odegru_forward.1} parent=1 // pred_region
      _
    $region49: #{recognition_odegru_forward.1} parent=1 // pred_fallthru
      _
    %1173 = vsyncpa [#allocation4], 1

</llo_original>
